<compile_context>
chip_gen: v6e
topology: v6e:2x2x1
jax: 0.10.0
libtpu: 0.0.40
codegen_flags: <defaults>
</compile_context>

<pallas_src>
import functools

import jax
import jax.numpy as jnp
from jax.experimental import pallas as pl
from jax.experimental.pallas import tpu as pltpu


def conv3x3_relu_kernel(x_ref, w_ref, b_ref, o_ref, xpad_ref, slab_ref):
    # x_ref    : (B, H, W, Cin)        unpadded NHWC input tile (bf16)
    # w_ref    : (9*Cin, Cout)         weights, rows ordered (ky, kx, cin) (bf16)
    # b_ref    : (1, Cout)             bias (f32)
    # o_ref    : (B, H, W, Cout)       output tile
    # xpad_ref : (B, H+2, Wp, Cin)     VMEM scratch: zero-padded input (bf16)
    # slab_ref : (B*H*W, 9*Cin)        VMEM scratch: im2col slab (bf16)
    B, H, W, Cin = x_ref.shape
    Cout = o_ref.shape[3]
    M = B * H * W

    # Build the zero-padded input directly in VMEM.  Zero every step: with
    # "parallel" grid sharding across TensorCores we cannot rely on a
    # program_id==0 init of a persistent scratch.
    xpad_ref[...] = jnp.zeros(xpad_ref.shape, xpad_ref.dtype)
    xpad_ref[:, 1:1 + H, 1:1 + W, :] = x_ref[...]
    xp = xpad_ref[...]

    # im2col: scatter the nine 3x3 taps into lane-aligned 128-wide column
    # groups of one (M, 9*Cin) slab.
    t = 0
    for ky in range(3):
        for kx in range(3):
            slab_ref[:, t * Cin:(t + 1) * Cin] = (
                xp[:, ky:ky + H, kx:kx + W, :].reshape(M, Cin))
            t += 1

    # Single K = 9*Cin matmul on the MXU: bf16 operands, f32 accumulation.
    acc = jnp.dot(slab_ref[...], w_ref[...], preferred_element_type=jnp.float32)
    acc = acc + b_ref[...]            # (1, Cout) broadcasts over M rows
    out = jnp.maximum(acc, 0.0)       # ReLU
    o_ref[...] = out.reshape(B, H, W, Cout).astype(o_ref.dtype)


def _round_up(x, m):
    return ((x + m - 1) // m) * m


def _per_image_vmem_bytes(h, w, w_pad, cin, cout, out_itemsize):
    return (2 * h * w * cin * 2                      # double-buffered bf16 input block
            + 2 * h * w * cout * out_itemsize        # double-buffered output block
            + (h + 2) * w_pad * cin * 2              # padded-input scratch
            + h * w * 9 * cin * 2                    # im2col slab scratch
            + h * w * cout * 4)                      # f32 matmul result


def _choose_b_tile(n, h, w, w_pad, cin, cout, out_itemsize):
    """Pick how many images share one grid step (matmul M = b*h*w)."""
    # Large enough that the matmul dominates the ~0.35us per-grid-step overhead,
    # small enough that the f32 result + slab stay comfortably in VMEM.
    target_m = 1024
    per_img = _per_image_vmem_bytes(h, w, w_pad, cin, cout, out_itemsize)
    budget = 20 * 1024 * 1024        # conservative: v7x has 64 MiB VMEM total
    b = min(n, max(1, target_m // (h * w)), max(1, budget // per_img))
    # Keep at least 2 parallel grid steps when possible (v7x has 2 TensorCores).
    if n >= 2:
        b = min(b, max(1, n // 2))
    while n % b:
        b -= 1
    return b


def vlayer159_forward_nhwc(x_nhwc, w_oihw, bias):
    """Conv2d(128,128,k=3,p=1,s=1) + ReLU on an NHWC tensor (transpose-free core)."""
    N, H, W, Cin = x_nhwc.shape
    Cout = w_oihw.shape[0]
    out_dtype = x_nhwc.dtype
    out_itemsize = jnp.dtype(out_dtype).itemsize
    w_pad = _round_up(W + 2, 8)      # sublane-aligned padded width

    b_tile = _choose_b_tile(N, H, W, w_pad, Cin, Cout, out_itemsize)
    grid = (N // b_tile,)
    M = b_tile * H * W

    # bf16 operands for the MXU; accumulation stays f32 inside the kernel.
    x_bf16 = x_nhwc.astype(jnp.bfloat16)
    # OIHW -> HWIO -> (9*Cin, Cout); row ordering (ky, kx, cin) matches the
    # kernel's im2col column ordering.
    w_mat = jnp.transpose(w_oihw, (2, 3, 1, 0)).reshape(9 * Cin, Cout)
    w_mat = w_mat.astype(jnp.bfloat16)
    b2 = bias.reshape(1, Cout).astype(jnp.float32)

    # Explicit VMEM budget (default scoped limit may be tight for the slab).
    vmem_needed = (b_tile * _per_image_vmem_bytes(H, W, w_pad, Cin, Cout, out_itemsize)
                   + 2 * 9 * Cin * Cout * 2          # double-buffered weights
                   + 2 * Cout * 4                    # bias
                   + (1 << 20))                      # misc headroom
    vmem_limit = int(min(max(vmem_needed + (4 << 20), 16 * 1024 * 1024),
                         48 * 1024 * 1024))

    return pl.pallas_call(
        conv3x3_relu_kernel,
        out_shape=jax.ShapeDtypeStruct((N, H, W, Cout), out_dtype),
        grid=grid,
        in_specs=[
            pl.BlockSpec((b_tile, H, W, Cin), lambda n: (n, 0, 0, 0)),
            pl.BlockSpec((9 * Cin, Cout), lambda n: (0, 0)),
            pl.BlockSpec((1, Cout), lambda n: (0, 0)),
        ],
        out_specs=pl.BlockSpec((b_tile, H, W, Cout), lambda n: (n, 0, 0, 0)),
        scratch_shapes=[
            pltpu.VMEM((b_tile, H + 2, w_pad, Cin), jnp.bfloat16),  # padded input
            pltpu.VMEM((M, 9 * Cin), jnp.bfloat16),                 # im2col slab
        ],
        compiler_params=pltpu.CompilerParams(
            dimension_semantics=("parallel",),
            vmem_limit_bytes=vmem_limit),
    )(x_bf16, w_mat, b2)


@functools.partial(jax.jit, static_argnames=())
def vlayer159_forward(x_nchw, w_oihw, bias):
    """PyTorch-convention wrapper: NCHW in / NCHW out.

    If the surrounding model is channels-last, call vlayer159_forward_nhwc
    directly to avoid these two layout transposes (the bf16 cast fuses into
    the transpose here, so it costs no extra HBM pass on this path).
    """
    x_nhwc = jnp.transpose(x_nchw, (0, 2, 3, 1))
    out_nhwc = vlayer159_forward_nhwc(x_nhwc, w_oihw, bias)
    return jnp.transpose(out_nhwc, (0, 3, 1, 2))


def init_params(key):
    """Kaiming-normal (fan_out, relu) init, zero bias — as in _initialize_weights."""
    Cin, Cout, k = 128, 128, 3
    fan_out = Cout * k * k
    std = (2.0 / fan_out) ** 0.5
    w = jax.random.normal(key, (Cout, Cin, k, k), dtype=jnp.float32) * std  # OIHW
    b = jnp.zeros((Cout,), dtype=jnp.float32)
    return w, b


if __name__ == "__main__":
    key = jax.random.PRNGKey(0)
    k_w, k_x = jax.random.split(key)

    w_oihw, bias = init_params(k_w)

    # Small spatial dims; channel count (128) is fixed by the module.
    N, C, H, W = 2, 128, 8, 8
    x = jax.random.normal(k_x, (N, C, H, W), dtype=jnp.float32)

    out = vlayer159_forward(x, w_oihw, bias)
    out = jax.block_until_ready(out)

    # Reference check against XLA's conv (plain JAX, not part of the hot path).
    # Tolerance relaxed for bf16 matmul operands (accumulation is f32).
    ref = jax.lax.conv_general_dilated(
        x, w_oihw, window_strides=(1, 1), padding="SAME",
        dimension_numbers=("NCHW", "OIHW", "NCHW"))
    ref = jnp.maximum(ref + bias[None, :, None, None], 0.0)
    assert out.shape == (N, C, H, W)
    assert jnp.allclose(out, ref, atol=5e-2, rtol=5e-2), "mismatch vs reference conv"

    print("KERNEL_OK")
</pallas_src>

<mosaic_0001>
module attributes {stable_mosaic.version = 11 : i64} {
  func.func @conv3x3_relu_kernel(%arg0: i32, %arg1: memref<1x8x8x128xbf16, #tpu.memory_space<vmem>>, %arg2: memref<1152x128xbf16, #tpu.memory_space<vmem>>, %arg3: memref<1x128xf32, #tpu.memory_space<vmem>>, %arg4: memref<1x8x8x128xf32, #tpu.memory_space<vmem>>, %arg5: memref<1x10x16x128xbf16, #tpu.memory_space<vmem>>, %arg6: memref<64x1152xbf16, #tpu.memory_space<vmem>>) attributes {dimension_semantics = [#tpu.dimension_semantics<parallel>], iteration_bounds = array<i64: 2>, scalar_prefetch = 0 : i64, scratch_operands = 2 : i64, tpu.core_type = #tpu.core_type<tc>, window_params = [{transform_indices = @transform_0, window_bounds = array<i64: 1, 8, 8, 128>}, {pipeline_mode = #tpu.pipeline_mode<synchronous>, transform_indices = @transform_1, window_bounds = array<i64: 1152, 128>}, {pipeline_mode = #tpu.pipeline_mode<synchronous>, transform_indices = @transform_2, window_bounds = array<i64: 1, 128>}, {transform_indices = @transform_3, window_bounds = array<i64: 1, 8, 8, 128>}]} {
    %cst = arith.constant 0.000000e+00 : bf16
    %0 = vector.broadcast %cst : bf16 to vector<1x10x16x128xbf16>
    %c0 = arith.constant 0 : index
    %c0_0 = arith.constant 0 : index
    %c0_1 = arith.constant 0 : index
    %c0_2 = arith.constant 0 : index
    %1 = vector.load %arg5[%c0, %c0_0, %c0_1, %c0_2] : memref<1x10x16x128xbf16, #tpu.memory_space<vmem>>, vector<1x10x16x128xbf16>
    tpu.vector_store %arg5[%c0, %c0_0, %c0_1, %c0_2], %0 {strides = array<i32>} : memref<1x10x16x128xbf16, #tpu.memory_space<vmem>>, vector<1x10x16x128xbf16>,
    %c0_3 = arith.constant 0 : index
    %c0_4 = arith.constant 0 : index
    %c0_5 = arith.constant 0 : index
    %c0_6 = arith.constant 0 : index
    %2 = vector.load %arg1[%c0_3, %c0_4, %c0_5, %c0_6] : memref<1x8x8x128xbf16, #tpu.memory_space<vmem>>, vector<1x8x8x128xbf16>
    %c0_7 = arith.constant 0 : index
    %c1 = arith.constant 1 : index
    %c1_8 = arith.constant 1 : index
    %c0_9 = arith.constant 0 : index
    %3 = vector.load %arg5[%c0_7, %c1, %c1_8, %c0_9] : memref<1x10x16x128xbf16, #tpu.memory_space<vmem>>, vector<1x8x8x128xbf16>
    tpu.vector_store %arg5[%c0_7, %c1, %c1_8, %c0_9], %2 {strides = array<i32>} : memref<1x10x16x128xbf16, #tpu.memory_space<vmem>>, vector<1x8x8x128xbf16>,
    %c0_10 = arith.constant 0 : index
    %c0_11 = arith.constant 0 : index
    %c0_12 = arith.constant 0 : index
    %c0_13 = arith.constant 0 : index
    %4 = vector.load %arg5[%c0_10, %c0_11, %c0_12, %c0_13] : memref<1x10x16x128xbf16, #tpu.memory_space<vmem>>, vector<1x10x16x128xbf16>
    %5 = vector.extract_strided_slice %4 {offsets = [0, 0, 0, 0], sizes = [1, 8, 8, 128], strides = [1, 1, 1, 1]} : vector<1x10x16x128xbf16> to vector<1x8x8x128xbf16>
    %6 = vector.shape_cast %5 : vector<1x8x8x128xbf16> to vector<64x128xbf16>
    %c0_14 = arith.constant 0 : index
    %c0_15 = arith.constant 0 : index
    %7 = vector.load %arg6[%c0_14, %c0_15] : memref<64x1152xbf16, #tpu.memory_space<vmem>>, vector<64x128xbf16>
    tpu.vector_store %arg6[%c0_14, %c0_15], %6 {strides = array<i32>} : memref<64x1152xbf16, #tpu.memory_space<vmem>>, vector<64x128xbf16>,
    %8 = vector.extract_strided_slice %4 {offsets = [0, 0, 1, 0], sizes = [1, 8, 8, 128], strides = [1, 1, 1, 1]} : vector<1x10x16x128xbf16> to vector<1x8x8x128xbf16>
    %9 = vector.shape_cast %8 : vector<1x8x8x128xbf16> to vector<64x128xbf16>
    %c0_16 = arith.constant 0 : index
    %c128 = arith.constant 128 : index
    %10 = vector.load %arg6[%c0_16, %c128] : memref<64x1152xbf16, #tpu.memory_space<vmem>>, vector<64x128xbf16>
    tpu.vector_store %arg6[%c0_16, %c128], %9 {strides = array<i32>} : memref<64x1152xbf16, #tpu.memory_space<vmem>>, vector<64x128xbf16>,
    %11 = vector.extract_strided_slice %4 {offsets = [0, 0, 2, 0], sizes = [1, 8, 8, 128], strides = [1, 1, 1, 1]} : vector<1x10x16x128xbf16> to vector<1x8x8x128xbf16>
    %12 = vector.shape_cast %11 : vector<1x8x8x128xbf16> to vector<64x128xbf16>
    %c0_17 = arith.constant 0 : index
    %c256 = arith.constant 256 : index
    %13 = vector.load %arg6[%c0_17, %c256] : memref<64x1152xbf16, #tpu.memory_space<vmem>>, vector<64x128xbf16>
    tpu.vector_store %arg6[%c0_17, %c256], %12 {strides = array<i32>} : memref<64x1152xbf16, #tpu.memory_space<vmem>>, vector<64x128xbf16>,
    %14 = vector.extract_strided_slice %4 {offsets = [0, 1, 0, 0], sizes = [1, 8, 8, 128], strides = [1, 1, 1, 1]} : vector<1x10x16x128xbf16> to vector<1x8x8x128xbf16>
    %15 = vector.shape_cast %14 : vector<1x8x8x128xbf16> to vector<64x128xbf16>
    %c0_18 = arith.constant 0 : index
    %c384 = arith.constant 384 : index
    %16 = vector.load %arg6[%c0_18, %c384] : memref<64x1152xbf16, #tpu.memory_space<vmem>>, vector<64x128xbf16>
    tpu.vector_store %arg6[%c0_18, %c384], %15 {strides = array<i32>} : memref<64x1152xbf16, #tpu.memory_space<vmem>>, vector<64x128xbf16>,
    %17 = vector.extract_strided_slice %4 {offsets = [0, 1, 1, 0], sizes = [1, 8, 8, 128], strides = [1, 1, 1, 1]} : vector<1x10x16x128xbf16> to vector<1x8x8x128xbf16>
    %18 = vector.shape_cast %17 : vector<1x8x8x128xbf16> to vector<64x128xbf16>
    %c0_19 = arith.constant 0 : index
    %c512 = arith.constant 512 : index
    %19 = vector.load %arg6[%c0_19, %c512] : memref<64x1152xbf16, #tpu.memory_space<vmem>>, vector<64x128xbf16>
    tpu.vector_store %arg6[%c0_19, %c512], %18 {strides = array<i32>} : memref<64x1152xbf16, #tpu.memory_space<vmem>>, vector<64x128xbf16>,
    %20 = vector.extract_strided_slice %4 {offsets = [0, 1, 2, 0], sizes = [1, 8, 8, 128], strides = [1, 1, 1, 1]} : vector<1x10x16x128xbf16> to vector<1x8x8x128xbf16>
    %21 = vector.shape_cast %20 : vector<1x8x8x128xbf16> to vector<64x128xbf16>
    %c0_20 = arith.constant 0 : index
    %c640 = arith.constant 640 : index
    %22 = vector.load %arg6[%c0_20, %c640] : memref<64x1152xbf16, #tpu.memory_space<vmem>>, vector<64x128xbf16>
    tpu.vector_store %arg6[%c0_20, %c640], %21 {strides = array<i32>} : memref<64x1152xbf16, #tpu.memory_space<vmem>>, vector<64x128xbf16>,
    %23 = vector.extract_strided_slice %4 {offsets = [0, 2, 0, 0], sizes = [1, 8, 8, 128], strides = [1, 1, 1, 1]} : vector<1x10x16x128xbf16> to vector<1x8x8x128xbf16>
    %24 = vector.shape_cast %23 : vector<1x8x8x128xbf16> to vector<64x128xbf16>
    %c0_21 = arith.constant 0 : index
    %c768 = arith.constant 768 : index
    %25 = vector.load %arg6[%c0_21, %c768] : memref<64x1152xbf16, #tpu.memory_space<vmem>>, vector<64x128xbf16>
    tpu.vector_store %arg6[%c0_21, %c768], %24 {strides = array<i32>} : memref<64x1152xbf16, #tpu.memory_space<vmem>>, vector<64x128xbf16>,
    %26 = vector.extract_strided_slice %4 {offsets = [0, 2, 1, 0], sizes = [1, 8, 8, 128], strides = [1, 1, 1, 1]} : vector<1x10x16x128xbf16> to vector<1x8x8x128xbf16>
    %27 = vector.shape_cast %26 : vector<1x8x8x128xbf16> to vector<64x128xbf16>
    %c0_22 = arith.constant 0 : index
    %c896 = arith.constant 896 : index
    %28 = vector.load %arg6[%c0_22, %c896] : memref<64x1152xbf16, #tpu.memory_space<vmem>>, vector<64x128xbf16>
    tpu.vector_store %arg6[%c0_22, %c896], %27 {strides = array<i32>} : memref<64x1152xbf16, #tpu.memory_space<vmem>>, vector<64x128xbf16>,
    %29 = vector.extract_strided_slice %4 {offsets = [0, 2, 2, 0], sizes = [1, 8, 8, 128], strides = [1, 1, 1, 1]} : vector<1x10x16x128xbf16> to vector<1x8x8x128xbf16>
    %30 = vector.shape_cast %29 : vector<1x8x8x128xbf16> to vector<64x128xbf16>
    %c0_23 = arith.constant 0 : index
    %c1024 = arith.constant 1024 : index
    %31 = vector.load %arg6[%c0_23, %c1024] : memref<64x1152xbf16, #tpu.memory_space<vmem>>, vector<64x128xbf16>
    tpu.vector_store %arg6[%c0_23, %c1024], %30 {strides = array<i32>} : memref<64x1152xbf16, #tpu.memory_space<vmem>>, vector<64x128xbf16>,
    %c0_24 = arith.constant 0 : index
    %c0_25 = arith.constant 0 : index
    %32 = vector.load %arg6[%c0_24, %c0_25] : memref<64x1152xbf16, #tpu.memory_space<vmem>>, vector<64x1152xbf16>
    %c0_26 = arith.constant 0 : index
    %c0_27 = arith.constant 0 : index
    %33 = vector.load %arg2[%c0_26, %c0_27] : memref<1152x128xbf16, #tpu.memory_space<vmem>>, vector<1152x128xbf16>
    %cst_28 = arith.constant dense<0.000000e+00> : vector<64x128xf32>
    %34 = tpu.matmul %32, %33, %cst_28 {dimension_numbers = #tpu.dot_dimension_numbers<[1], [0], [0], [1], [0, 0, 1, 1], [], []>} : vector<64x1152xbf16>, vector<1152x128xbf16>, vector<64x128xf32> -> vector<64x128xf32>
    %c0_29 = arith.constant 0 : index
    %c0_30 = arith.constant 0 : index
    %35 = vector.load %arg3[%c0_29, %c0_30] : memref<1x128xf32, #tpu.memory_space<vmem>>, vector<1x128xf32>
    %36 = vector.broadcast %35 : vector<1x128xf32> to vector<64x128xf32>
    %37 = arith.addf %34, %36 : vector<64x128xf32>
    %cst_31 = arith.constant 0.000000e+00 : f32
    %38 = vector.broadcast %cst_31 : f32 to vector<64x128xf32>
    %39 = arith.maximumf %37, %38 : vector<64x128xf32>
    %40 = vector.shape_cast %39 : vector<64x128xf32> to vector<1x8x8x128xf32>
    %c0_32 = arith.constant 0 : index
    %c0_33 = arith.constant 0 : index
    %c0_34 = arith.constant 0 : index
    %c0_35 = arith.constant 0 : index
    %41 = vector.load %arg4[%c0_32, %c0_33, %c0_34, %c0_35] : memref<1x8x8x128xf32, #tpu.memory_space<vmem>>, vector<1x8x8x128xf32>
    tpu.vector_store %arg4[%c0_32, %c0_33, %c0_34, %c0_35], %40 {strides = array<i32>} : memref<1x8x8x128xf32, #tpu.memory_space<vmem>>, vector<1x8x8x128xf32>,
    return
  }
  func.func @transform_0(%arg0: i32) -> (i32, i32, i32, i32) {
    %c0_i32 = arith.constant 0 : i32
    %c0_i32_0 = arith.constant 0 : i32
    %c0_i32_1 = arith.constant 0 : i32
    %c0_i32_2 = arith.constant 0 : i32
    return %arg0, %c0_i32, %c0_i32_0, %c0_i32_1 : i32, i32, i32, i32
  }
  func.func @transform_1(%arg0: i32) -> (i32, i32) {
    %c0_i32 = arith.constant 0 : i32
    %c0_i32_0 = arith.constant 0 : i32
    %c0_i32_1 = arith.constant 0 : i32
    return %c0_i32, %c0_i32_0 : i32, i32
  }
  func.func @transform_2(%arg0: i32) -> (i32, i32) {
    %c0_i32 = arith.constant 0 : i32
    %c0_i32_0 = arith.constant 0 : i32
    %c0_i32_1 = arith.constant 0 : i32
    return %c0_i32, %c0_i32_0 : i32, i32
  }
  func.func @transform_3(%arg0: i32) -> (i32, i32, i32, i32) {
    %c0_i32 = arith.constant 0 : i32
    %c0_i32_0 = arith.constant 0 : i32
    %c0_i32_1 = arith.constant 0 : i32
    %c0_i32_2 = arith.constant 0 : i32
    return %arg0, %c0_i32, %c0_i32_0, %c0_i32_1 : i32, i32, i32, i32
  }
}

</mosaic_0001>

<llo_original>
// kernel: vlayer159_forward.1
$region0: #{vlayer159_forward.1}
  #allocation0 [shape = 'u32[]', space=smem, size = 0x4, offset = 0x4, fixed_abs, tag = 'smem constant byte address 0x4 - core index']
  #allocation1 [shape = 'u32[144,128]{1,0:T(1,128)}', space=vmem, size = 0x12000, scoped, tag = 'internal scratch']
  #allocation2 [shape = 'bf16[1,10,16,128]{3,2,1,0:T(8,128)(2,1)}', space=vmem, size = 0xa000, scoped, tag = 'scratch operand']
  #allocation3 [shape = 'bf16[64,1152]{1,0:T(8,128)(2,1)}', space=vmem, size = 0x24000, scoped, tag = 'scratch operand']
  %s0 = inlined_call_operand.vmem [shape: bf16[2,8,8,128], index: 0, kind: input, shape index: {}]
  %s1 = inlined_call_operand.vmem [shape: bf16[1152,128], index: 1, kind: input, shape index: {}]
  %s2 = inlined_call_operand.vmem [shape: f32[1,128], index: 2, kind: input, shape index: {}]
  %s3 = inlined_call_operand.hbm [shape: f32[2,8,8,128], index: 3, kind: output, shape index: {}]
  %s4 = sld [smem:[#allocation0]]
  $region45: #{vlayer159_forward.1} parent=0
    _
  %s6 = ssub.s32 1, %s4
  %s7 = scalar_select 0, %s6, %s4
  $region1: #{vlayer159_forward.1} parent=0
    #allocation4 [shape = 'u8[65536]{0}', space=vmem, size = 0x10000, scoped, tag = 'output window, operand 0']
    #allocation5 [shape = 's32[2]{0}', space=sflag, size = 0x8, scoped, tag = 'scoped memory for vlayer159_forward.1']
    %8 = vsyncpa [#allocation5], 0
    %s9 = scalar_lea.sflag [#allocation5], 1
    %10 = vsyncpa %s9, 0
    loop: start=0, step=1, limit=4
    $region2: #{vlayer159_forward.1} parent=1 // loop_pre_header
      _
    $region3: #{vlayer159_forward.1} parent=1 // loop_header
      %s12 = sphi 0, %s16
      %p13 = scmp.ge.s32.totalorder %s12, 4
      %s22 = sphi 0, %s24
      %s25 = sphi 0, %s22
      %s26 = sphi 0, %s25
      %s42 = sphi 0, %s26
      %s46 = sphi 0, %s46
      %s48 = sphi 0, %s46
      %s49 = sphi 0, %s48
      %s63 = sphi 0, %s49
      %s67 = sphi 0, %s67
      %s69 = sphi 0, %s67
      %s70 = sphi 0, %s69
      %s84 = sphi 0, %s70
      %s90 = sphi 0, %s92
      %s93 = sphi 0, %s90
      %s94 = sphi 0, %s93
      %s110 = sphi 0, %s94
    $region4: #{vlayer159_forward.1} parent=1 // loop_header_branch
      %15 = sbr.rel (%p13) target = $region8
    $region5: #{vlayer159_forward.1} parent=1 // loop_body
      %s17 = ssub.s32 %s12, 1
      %s18 = ssub.s32 %s12, 2
      %s19 = sadd.s32 %s12, 1
      %s20 = ssub.s32 %s12, %s19
      %p21 = scmp.eq.s32.totalorder %s20, 0
      %s23 = sadd.s32 %s22, 1
      %s24 = scalar_select %p21, %s22, %s23
      %p27 = pneg %p21
      %p28 = scmp.eq.s32.totalorder %s12, 1
      %p29 = por %p27, %p28
      %p30 = scmp.ne.s32.totalorder %s22, %s25
      %p31 = scmp.eq.s32.totalorder %s12, 0
      %p32 = por %p30, %p31
      %p33 = scmp.ne.s32.totalorder %s22, %s25
      %p34 = scmp.eq.s32.totalorder %s17, 1
      %p35 = por %p33, %p34
      %p36 = scmp.ne.s32.totalorder %s25, %s26
      %p37 = scmp.eq.s32.totalorder %s17, 0
      %p38 = por %p36, %p37
      %p39 = scmp.ne.s32.totalorder %s25, %s26
      %p40 = scmp.eq.s32.totalorder %s18, 1
      %p41 = por %p39, %p40
      %p43 = scmp.ne.s32.totalorder %s26, %s42
      %p44 = scmp.eq.s32.totalorder %s18, 0
      %p45 = por %p43, %p44
      %s47 = sadd.s32 %s46, 1
      %p50 = scmp.eq.s32.totalorder %s12, 1
      %p51 = scmp.ne.s32.totalorder %s46, %s48
      %p52 = scmp.eq.s32.totalorder %s12, 0
      %p53 = por %p51, %p52
      %p54 = scmp.ne.s32.totalorder %s46, %s48
      %p55 = scmp.eq.s32.totalorder %s17, 1
      %p56 = por %p54, %p55
      %p57 = scmp.ne.s32.totalorder %s48, %s49
      %p58 = scmp.eq.s32.totalorder %s17, 0
      %p59 = por %p57, %p58
      %p60 = scmp.ne.s32.totalorder %s48, %s49
      %p61 = scmp.eq.s32.totalorder %s18, 1
      %p62 = por %p60, %p61
      %p64 = scmp.ne.s32.totalorder %s49, %s63
      %p65 = scmp.eq.s32.totalorder %s18, 0
      %p66 = por %p64, %p65
      %s68 = sadd.s32 %s67, 1
      %p71 = scmp.eq.s32.totalorder %s12, 1
      %p72 = scmp.ne.s32.totalorder %s67, %s69
      %p73 = scmp.eq.s32.totalorder %s12, 0
      %p74 = por %p72, %p73
      %p75 = scmp.ne.s32.totalorder %s67, %s69
      %p76 = scmp.eq.s32.totalorder %s17, 1
      %p77 = por %p75, %p76
      %p78 = scmp.ne.s32.totalorder %s69, %s70
      %p79 = scmp.eq.s32.totalorder %s17, 0
      %p80 = por %p78, %p79
      %p81 = scmp.ne.s32.totalorder %s69, %s70
      %p82 = scmp.eq.s32.totalorder %s18, 1
      %p83 = por %p81, %p82
      %p85 = scmp.ne.s32.totalorder %s70, %s84
      %p86 = scmp.eq.s32.totalorder %s18, 0
      %p87 = por %p85, %p86
      %s88 = ssub.s32 %s12, %s19
      %p89 = scmp.eq.s32.totalorder %s88, 0
      %s91 = sadd.s32 %s90, 1
      %s92 = scalar_select %p89, %s90, %s91
      %p95 = pneg %p89
      %p96 = scmp.eq.s32.totalorder %s12, 1
      %p97 = por %p95, %p96
      %p98 = scmp.ne.s32.totalorder %s90, %s93
      %p99 = scmp.eq.s32.totalorder %s12, 0
      %p100 = por %p98, %p99
      %p101 = scmp.ne.s32.totalorder %s90, %s93
      %p102 = scmp.eq.s32.totalorder %s17, 1
      %p103 = por %p101, %p102
      %p104 = scmp.ne.s32.totalorder %s93, %s94
      %p105 = scmp.eq.s32.totalorder %s17, 0
      %p106 = por %p104, %p105
      %p107 = scmp.ne.s32.totalorder %s93, %s94
      %p108 = scmp.eq.s32.totalorder %s18, 1
      %p109 = por %p107, %p108
      %p111 = scmp.ne.s32.totalorder %s94, %s110
      %p112 = scmp.eq.s32.totalorder %s18, 0
      %p113 = por %p111, %p112
      %p114 = scmp.le.s32.totalorder 1, %s12
      %p115 = scmp.lt.s32.totalorder %s12, 3
      %p116 = pnand %p114, %p115
      %p117 = pneg %p116
      // Predicated region
      $region9: #{vlayer159_forward.1} parent=5 // pred_check
        _
      $region10: #{vlayer159_forward.1} parent=5 // pred_check_branch
        %119 = sbr.rel (%p116) target = $region12
      $region11: #{vlayer159_forward.1} parent=5 // pred_region
        %s120 = ssub.s32 %s12, 1
        // Predicated region
        $region13: #{vlayer159_forward.1} parent=11 // pred_check
          %p121 = pneg %p59
        $region14: #{vlayer159_forward.1} parent=11 // pred_check_branch
          %123 = sbr.rel (%p121) target = $region16
        $region15: #{vlayer159_forward.1} parent=11 // pred_region
          _
        $region16: #{vlayer159_forward.1} parent=11 // pred_fallthru
          _
        // Predicated region
        $region17: #{vlayer159_forward.1} parent=11 // pred_check
          %p124 = pneg %p80
        $region18: #{vlayer159_forward.1} parent=11 // pred_check_branch
          %126 = sbr.rel (%p124) target = $region20
        $region19: #{vlayer159_forward.1} parent=11 // pred_region
          _
        $region20: #{vlayer159_forward.1} parent=11 // pred_fallthru
          _
      $region12: #{vlayer159_forward.1} parent=5 // pred_fallthru
        _
      %p127 = scmp.lt.s32.totalorder %s12, 2
      // Predicated region
      $region21: #{vlayer159_forward.1} parent=5 // pred_check
        %p128 = pneg %p127
      $region22: #{vlayer159_forward.1} parent=5 // pred_check_branch
        %130 = sbr.rel (%p128) target = $region24
      $region23: #{vlayer159_forward.1} parent=5 // pred_region
        // Predicated region
        $region25: #{vlayer159_forward.1} parent=23 // pred_check
          %p131 = pneg %p32
        $region26: #{vlayer159_forward.1} parent=23 // pred_check_branch
          %133 = sbr.rel (%p131) target = $region28
        $region27: #{vlayer159_forward.1} parent=23 // pred_region
          %p134 = scmp.lt.s32.totalorder %s12, 1
          %s135 = scalar_select %p134, %s12, 1
          %s136 = smul.addr %s135, 8
          %s137 = smul.addr %s136, 4
          %s138 = scalar_lea.vmem %s0, %s137
        $region28: #{vlayer159_forward.1} parent=23 // pred_fallthru
          _
      $region24: #{vlayer159_forward.1} parent=5 // pred_fallthru
        _
      %p139 = scmp.le.s32.totalorder 1, %s12
      %p140 = scmp.lt.s32.totalorder %s12, 3
      %p141 = pnand %p139, %p140
      %p142 = pneg %p141
      // Predicated region
      $region29: #{vlayer159_forward.1} parent=5 // pred_check
        _
      $region30: #{vlayer159_forward.1} parent=5 // pred_check_branch
        %144 = sbr.rel (%p141) target = $region32
      $region31: #{vlayer159_forward.1} parent=5 // pred_region
        %s145 = ssub.s32 %s12, 1
        %p146 = scmp.lt.s32.totalorder %s17, 1
        %s147 = scalar_select %p146, %s17, 1
        %s148 = smul.addr %s147, 8
        %s149 = smul.addr %s148, 4
        %s150 = scalar_lea.vmem %s0, %s149
        %p151 = pneg %p38
        %p152 = pneg %p35
        %p153 = pneg %p59
        %p154 = pneg %p56
        %p155 = pneg %p80
        %p156 = pneg %p77
        %p157 = pneg %p106
        %p158 = pneg %p103
        %s159 = sand.u32 %s93, 1
        %s160 = scalar_lea.sflag [#allocation5], %s159
        %s161 = sand.u32 %s93, 1
        %s162 = smul.addr %s161, 64
        %s163 = scalar_lea.vmem [#allocation4], %s162
        %p164 = scmp.lt.s32.totalorder %s17, 1
        %s165 = scalar_select %p164, %s17, 1
        %s166 = smul.addr %s165, 8
        %s167 = smul.addr %s166, 4
        %s168 = scalar_lea.vmem %s0, %s167
        %170 = vst [vmem:[#allocation2] sm:$0xf] 0
        %171 = vst [vmem:[#allocation2 + $0x4] sm:$0xf] 0
        %172 = vst [vmem:[#allocation2 + $0x8] sm:$0xf] 0
        %173 = vst [vmem:[#allocation2 + $0xc] sm:$0xf] 0
        %174 = vst [vmem:[#allocation2 + $0x10] sm:$0xf] 0
        %175 = vst [vmem:[#allocation2 + $0x14] sm:$0xf] 0
        %176 = vst [vmem:[#allocation2 + $0x18] sm:$0xf] 0
        %177 = vst [vmem:[#allocation2 + $0x1c] sm:$0xf] 0
        %178 = vst [vmem:[#allocation2 + $0x20] sm:$0xf] 0
        %179 = vst [vmem:[#allocation2 + $0x24] sm:$0xf] 0
        %180 = vst [vmem:[#allocation2 + $0x28] sm:$0xf] 0
        %181 = vst [vmem:[#allocation2 + $0x2c] sm:$0xf] 0
        %182 = vst [vmem:[#allocation2 + $0x30] sm:$0xf] 0
        %183 = vst [vmem:[#allocation2 + $0x34] sm:$0xf] 0
        %184 = vst [vmem:[#allocation2 + $0x38] sm:$0xf] 0
        %185 = vst [vmem:[#allocation2 + $0x3c] sm:$0xf] 0
        %186 = vst [vmem:[#allocation2 + $0x40] sm:$0xf] 0
        %187 = vst [vmem:[#allocation2 + $0x44] sm:$0xf] 0
        %188 = vst [vmem:[#allocation2 + $0x48] sm:$0xf] 0
        %189 = vst [vmem:[#allocation2 + $0x4c] sm:$0xf] 0
        %v190 = vld [vmem:[%s168] sm:$0xf]
        %v191 = vld [vmem:[%s168 + $0x4] sm:$0xf]
        %v192 = vld [vmem:[%s168 + $0x8] sm:$0xf]
        %v193 = vld [vmem:[%s168 + $0xc] sm:$0xf]
        %v194 = vld [vmem:[%s168 + $0x10] sm:$0xf]
        %v195 = vld [vmem:[%s168 + $0x14] sm:$0xf]
        %v196 = vld [vmem:[%s168 + $0x18] sm:$0xf]
        %v197 = vld [vmem:[%s168 + $0x1c] sm:$0xf]
        %v199 = vshrl.u32 %v190, 16
        %v201 = vrot.slane %v199, 7
        %v202 = vshll.u32 %v190, 16
        %v204 = vor.u32 %v201, %v202
        %v205 = vrot.slane %v201, 4
        %v207 = vshrl.u32 %v191, 16
        %v209 = vrot.slane %v207, 7
        %v210 = vshll.u32 %v191, 16
        %v212 = vor.u32 %v209, %v210
        %v213 = vrot.slane %v209, 4
        %v215 = vshrl.u32 %v192, 16
        %v217 = vrot.slane %v215, 7
        %v218 = vshll.u32 %v192, 16
        %v220 = vor.u32 %v217, %v218
        %v221 = vrot.slane %v217, 4
        %v223 = vshrl.u32 %v193, 16
        %v225 = vrot.slane %v223, 7
        %v226 = vshll.u32 %v193, 16
        %v228 = vor.u32 %v225, %v226
        %v229 = vrot.slane %v225, 4
        %v231 = vshrl.u32 %v194, 16
        %v233 = vrot.slane %v231, 7
        %v234 = vshll.u32 %v194, 16
        %v236 = vor.u32 %v233, %v234
        %v237 = vrot.slane %v233, 4
        %v239 = vshrl.u32 %v195, 16
        %v241 = vrot.slane %v239, 7
        %v242 = vshll.u32 %v195, 16
        %v244 = vor.u32 %v241, %v242
        %v245 = vrot.slane %v241, 4
        %v247 = vshrl.u32 %v196, 16
        %v249 = vrot.slane %v247, 7
        %v250 = vshll.u32 %v196, 16
        %v252 = vor.u32 %v249, %v250
        %v253 = vrot.slane %v249, 4
        %v255 = vshrl.u32 %v197, 16
        %v257 = vrot.slane %v255, 7
        %v258 = vshll.u32 %v197, 16
        %v260 = vor.u32 %v257, %v258
        %v261 = vrot.slane %v257, 4
        %s278 = scalar_lea.vmem [#allocation2], 8
        %vm279 = vcmask 1043456
        %vm280 = vsmask.f32 7938
        %vm281 = vmand %vm279, %vm280
        %v282 = vld [vmem:[%s278] sm:$0xf]
        %v283 = vsel %vm281, %v204, %v282
        %284 = vst [vmem:[%s278] sm:$0xf] %v283
        %vm285 = vcmask 1040384
        %vm286 = vsmask.f32 256
        %vm287 = vmand %vm285, %vm286
        %v288 = vld [vmem:[%s278 + $0x4] sm:$0x1]
        %v289 = vsel %vm287, %v205, %v288
        %290 = vst [vmem:[%s278 + $0x4] sm:$0x1] %v289
        %v291 = vld [vmem:[%s278 + $0x8] sm:$0xf]
        %v292 = vsel %vm281, %v212, %v291
        %293 = vst [vmem:[%s278 + $0x8] sm:$0xf] %v292
        %v294 = vld [vmem:[%s278 + $0xc] sm:$0x1]
        %v295 = vsel %vm287, %v213, %v294
        %296 = vst [vmem:[%s278 + $0xc] sm:$0x1] %v295
        %v297 = vld [vmem:[%s278 + $0x10] sm:$0xf]
        %v298 = vsel %vm281, %v220, %v297
        %299 = vst [vmem:[%s278 + $0x10] sm:$0xf] %v298
        %v300 = vld [vmem:[%s278 + $0x14] sm:$0x1]
        %v301 = vsel %vm287, %v221, %v300
        %302 = vst [vmem:[%s278 + $0x14] sm:$0x1] %v301
        %v303 = vld [vmem:[%s278 + $0x18] sm:$0xf]
        %v304 = vsel %vm281, %v228, %v303
        %305 = vst [vmem:[%s278 + $0x18] sm:$0xf] %v304
        %v306 = vld [vmem:[%s278 + $0x1c] sm:$0x1]
        %v307 = vsel %vm287, %v229, %v306
        %308 = vst [vmem:[%s278 + $0x1c] sm:$0x1] %v307
        %v309 = vld [vmem:[%s278 + $0x20] sm:$0xf]
        %v310 = vsel %vm281, %v236, %v309
        %311 = vst [vmem:[%s278 + $0x20] sm:$0xf] %v310
        %v312 = vld [vmem:[%s278 + $0x24] sm:$0x1]
        %v313 = vsel %vm287, %v237, %v312
        %314 = vst [vmem:[%s278 + $0x24] sm:$0x1] %v313
        %v315 = vld [vmem:[%s278 + $0x28] sm:$0xf]
        %v316 = vsel %vm281, %v244, %v315
        %317 = vst [vmem:[%s278 + $0x28] sm:$0xf] %v316
        %v318 = vld [vmem:[%s278 + $0x2c] sm:$0x1]
        %v319 = vsel %vm287, %v245, %v318
        %320 = vst [vmem:[%s278 + $0x2c] sm:$0x1] %v319
        %v321 = vld [vmem:[%s278 + $0x30] sm:$0xf]
        %v322 = vsel %vm281, %v252, %v321
        %323 = vst [vmem:[%s278 + $0x30] sm:$0xf] %v322
        %v324 = vld [vmem:[%s278 + $0x34] sm:$0x1]
        %v325 = vsel %vm287, %v253, %v324
        %326 = vst [vmem:[%s278 + $0x34] sm:$0x1] %v325
        %v327 = vld [vmem:[%s278 + $0x38] sm:$0xf]
        %v328 = vsel %vm281, %v260, %v327
        %329 = vst [vmem:[%s278 + $0x38] sm:$0xf] %v328
        %v330 = vld [vmem:[%s278 + $0x3c] sm:$0x1]
        %v331 = vsel %vm287, %v261, %v330
        %332 = vst [vmem:[%s278 + $0x3c] sm:$0x1] %v331
        %v333 = vld [vmem:[#allocation2] sm:$0xf]
        %v334 = vld [vmem:[#allocation2 + $0x4] sm:$0xf]
        %v335 = vld [vmem:[#allocation2 + $0x8] sm:$0xf]
        %v336 = vld [vmem:[#allocation2 + $0xc] sm:$0xf]
        %v337 = vld [vmem:[#allocation2 + $0x10] sm:$0xf]
        %v338 = vld [vmem:[#allocation2 + $0x14] sm:$0xf]
        %v339 = vld [vmem:[#allocation2 + $0x18] sm:$0xf]
        %v340 = vld [vmem:[#allocation2 + $0x1c] sm:$0xf]
        %v341 = vld [vmem:[#allocation2 + $0x20] sm:$0xf]
        %v342 = vld [vmem:[#allocation2 + $0x24] sm:$0xf]
        %v343 = vld [vmem:[#allocation2 + $0x28] sm:$0xf]
        %v344 = vld [vmem:[#allocation2 + $0x2c] sm:$0xf]
        %v345 = vld [vmem:[#allocation2 + $0x30] sm:$0xf]
        %v346 = vld [vmem:[#allocation2 + $0x34] sm:$0xf]
        %v347 = vld [vmem:[#allocation2 + $0x38] sm:$0xf]
        %v348 = vld [vmem:[#allocation2 + $0x3c] sm:$0xf]
        %v349 = vld [vmem:[#allocation2 + $0x40] sm:$0xf]
        %v350 = vld [vmem:[#allocation2 + $0x44] sm:$0xf]
        %v351 = vld [vmem:[#allocation2 + $0x48] sm:$0xf]
        %v352 = vld [vmem:[#allocation2 + $0x4c] sm:$0xf]
        %353 = vst [vmem:[#allocation3] sm:$0xf] %v333
        %354 = vst [vmem:[#allocation3 + $0x24] sm:$0xf] %v335
        %355 = vst [vmem:[#allocation3 + $0x48] sm:$0xf] %v337
        %356 = vst [vmem:[#allocation3 + $0x6c] sm:$0xf] %v339
        %357 = vst [vmem:[#allocation3 + $0x90] sm:$0xf] %v341
        %358 = vst [vmem:[#allocation3 + $0xb4] sm:$0xf] %v343
        %359 = vst [vmem:[#allocation3 + $0xd8] sm:$0xf] %v345
        %360 = vst [vmem:[#allocation3 + $0xfc] sm:$0xf] %v347
        %vm361 = vsmask.f32 3328
        %vm362 = vsmask.f32 7440
        %vm363 = vmor %vm361, %vm362
        %v365 = vshrl.u32 %v333, 16
        %v367 = vrot.slane %v365, 4
        %v368 = vshll.u32 %v333, 16
        %v370 = vrot.slane %v368, 5
        %v371 = vor.u32 %v367, %v370
        %v372 = vrot.slane %v371, 4
        %v374 = vshll.u32 %v334, 16
        %v376 = vrot.slane %v374, 5
        %v377 = vsel %vm363, %v372, %v376
        %v379 = vshrl.u32 %v335, 16
        %v381 = vrot.slane %v379, 4
        %v382 = vshll.u32 %v335, 16
        %v384 = vrot.slane %v382, 5
        %v385 = vor.u32 %v381, %v384
        %v386 = vrot.slane %v385, 4
        %v388 = vshll.u32 %v336, 16
        %v390 = vrot.slane %v388, 5
        %v391 = vsel %vm363, %v386, %v390
        %v393 = vshrl.u32 %v337, 16
        %v395 = vrot.slane %v393, 4
        %v396 = vshll.u32 %v337, 16
        %v398 = vrot.slane %v396, 5
        %v399 = vor.u32 %v395, %v398
        %v400 = vrot.slane %v399, 4
        %v402 = vshll.u32 %v338, 16
        %v404 = vrot.slane %v402, 5
        %v405 = vsel %vm363, %v400, %v404
        %v407 = vshrl.u32 %v339, 16
        %v409 = vrot.slane %v407, 4
        %v410 = vshll.u32 %v339, 16
        %v412 = vrot.slane %v410, 5
        %v413 = vor.u32 %v409, %v412
        %v414 = vrot.slane %v413, 4
        %v416 = vshll.u32 %v340, 16
        %v418 = vrot.slane %v416, 5
        %v419 = vsel %vm363, %v414, %v418
        %v421 = vshrl.u32 %v341, 16
        %v423 = vrot.slane %v421, 4
        %v424 = vshll.u32 %v341, 16
        %v426 = vrot.slane %v424, 5
        %v427 = vor.u32 %v423, %v426
        %v428 = vrot.slane %v427, 4
        %v430 = vshll.u32 %v342, 16
        %v432 = vrot.slane %v430, 5
        %v433 = vsel %vm363, %v428, %v432
        %v435 = vshrl.u32 %v343, 16
        %v437 = vrot.slane %v435, 4
        %v438 = vshll.u32 %v343, 16
        %v440 = vrot.slane %v438, 5
        %v441 = vor.u32 %v437, %v440
        %v442 = vrot.slane %v441, 4
        %v444 = vshll.u32 %v344, 16
        %v446 = vrot.slane %v444, 5
        %v447 = vsel %vm363, %v442, %v446
        %v449 = vshrl.u32 %v345, 16
        %v451 = vrot.slane %v449, 4
        %v452 = vshll.u32 %v345, 16
        %v454 = vrot.slane %v452, 5
        %v455 = vor.u32 %v451, %v454
        %v456 = vrot.slane %v455, 4
        %v458 = vshll.u32 %v346, 16
        %v460 = vrot.slane %v458, 5
        %v461 = vsel %vm363, %v456, %v460
        %v463 = vshrl.u32 %v347, 16
        %v465 = vrot.slane %v463, 4
        %v466 = vshll.u32 %v347, 16
        %v468 = vrot.slane %v466, 5
        %v469 = vor.u32 %v465, %v468
        %v470 = vrot.slane %v469, 4
        %v472 = vshll.u32 %v348, 16
        %v474 = vrot.slane %v472, 5
        %v475 = vsel %vm363, %v470, %v474
        %484 = vst [vmem:[#allocation3 + $0x4] sm:$0xf] %v377
        %485 = vst [vmem:[#allocation3 + $0x28] sm:$0xf] %v391
        %486 = vst [vmem:[#allocation3 + $0x4c] sm:$0xf] %v405
        %487 = vst [vmem:[#allocation3 + $0x70] sm:$0xf] %v419
        %488 = vst [vmem:[#allocation3 + $0x94] sm:$0xf] %v433
        %489 = vst [vmem:[#allocation3 + $0xb8] sm:$0xf] %v447
        %490 = vst [vmem:[#allocation3 + $0xdc] sm:$0xf] %v461
        %491 = vst [vmem:[#allocation3 + $0x100] sm:$0xf] %v475
        %vm508 = vcmask 1042432
        %vm509 = vcmask 1046532
        %vm510 = vmor %vm508, %vm509
        %v511 = vrot.slane %v333, 5
        %v512 = vrot.slane %v511, 4
        %v513 = vrot.slane %v334, 5
        %v514 = vsel %vm510, %v512, %v513
        %v515 = vrot.slane %v335, 5
        %v516 = vrot.slane %v515, 4
        %v517 = vrot.slane %v336, 5
        %v518 = vsel %vm510, %v516, %v517
        %v519 = vrot.slane %v337, 5
        %v520 = vrot.slane %v519, 4
        %v521 = vrot.slane %v338, 5
        %v522 = vsel %vm510, %v520, %v521
        %v523 = vrot.slane %v339, 5
        %v524 = vrot.slane %v523, 4
        %v525 = vrot.slane %v340, 5
        %v526 = vsel %vm510, %v524, %v525
        %v527 = vrot.slane %v341, 5
        %v528 = vrot.slane %v527, 4
        %v529 = vrot.slane %v342, 5
        %v530 = vsel %vm510, %v528, %v529
        %v531 = vrot.slane %v343, 5
        %v532 = vrot.slane %v531, 4
        %v533 = vrot.slane %v344, 5
        %v534 = vsel %vm510, %v532, %v533
        %v535 = vrot.slane %v345, 5
        %v536 = vrot.slane %v535, 4
        %v537 = vrot.slane %v346, 5
        %v538 = vsel %vm510, %v536, %v537
        %v539 = vrot.slane %v347, 5
        %v540 = vrot.slane %v539, 4
        %v541 = vrot.slane %v348, 5
        %v542 = vsel %vm510, %v540, %v541
        %551 = vst [vmem:[#allocation3 + $0x8] sm:$0xf] %v514
        %552 = vst [vmem:[#allocation3 + $0x2c] sm:$0xf] %v518
        %553 = vst [vmem:[#allocation3 + $0x50] sm:$0xf] %v522
        %554 = vst [vmem:[#allocation3 + $0x74] sm:$0xf] %v526
        %555 = vst [vmem:[#allocation3 + $0x98] sm:$0xf] %v530
        %556 = vst [vmem:[#allocation3 + $0xbc] sm:$0xf] %v534
        %557 = vst [vmem:[#allocation3 + $0xe0] sm:$0xf] %v538
        %558 = vst [vmem:[#allocation3 + $0x104] sm:$0xf] %v542
        %559 = vst [vmem:[#allocation3 + $0xc] sm:$0xf] %v335
        %560 = vst [vmem:[#allocation3 + $0x30] sm:$0xf] %v337
        %561 = vst [vmem:[#allocation3 + $0x54] sm:$0xf] %v339
        %562 = vst [vmem:[#allocation3 + $0x78] sm:$0xf] %v341
        %563 = vst [vmem:[#allocation3 + $0x9c] sm:$0xf] %v343
        %564 = vst [vmem:[#allocation3 + $0xc0] sm:$0xf] %v345
        %565 = vst [vmem:[#allocation3 + $0xe4] sm:$0xf] %v347
        %566 = vst [vmem:[#allocation3 + $0x108] sm:$0xf] %v349
        %v568 = vshrl.u32 %v349, 16
        %v570 = vrot.slane %v568, 4
        %v571 = vshll.u32 %v349, 16
        %v573 = vrot.slane %v571, 5
        %v574 = vor.u32 %v570, %v573
        %v575 = vrot.slane %v574, 4
        %v577 = vshll.u32 %v350, 16
        %v579 = vrot.slane %v577, 5
        %v580 = vsel %vm363, %v575, %v579
        %582 = vst [vmem:[#allocation3 + $0x10] sm:$0xf] %v391
        %583 = vst [vmem:[#allocation3 + $0x34] sm:$0xf] %v405
        %584 = vst [vmem:[#allocation3 + $0x58] sm:$0xf] %v419
        %585 = vst [vmem:[#allocation3 + $0x7c] sm:$0xf] %v433
        %586 = vst [vmem:[#allocation3 + $0xa0] sm:$0xf] %v447
        %587 = vst [vmem:[#allocation3 + $0xc4] sm:$0xf] %v461
        %588 = vst [vmem:[#allocation3 + $0xe8] sm:$0xf] %v475
        %589 = vst [vmem:[#allocation3 + $0x10c] sm:$0xf] %v580
        %v592 = vrot.slane %v349, 5
        %v593 = vrot.slane %v592, 4
        %v594 = vrot.slane %v350, 5
        %v595 = vsel %vm510, %v593, %v594
        %597 = vst [vmem:[#allocation3 + $0x14] sm:$0xf] %v518
        %598 = vst [vmem:[#allocation3 + $0x38] sm:$0xf] %v522
        %599 = vst [vmem:[#allocation3 + $0x5c] sm:$0xf] %v526
        %600 = vst [vmem:[#allocation3 + $0x80] sm:$0xf] %v530
        %601 = vst [vmem:[#allocation3 + $0xa4] sm:$0xf] %v534
        %602 = vst [vmem:[#allocation3 + $0xc8] sm:$0xf] %v538
        %603 = vst [vmem:[#allocation3 + $0xec] sm:$0xf] %v542
        %604 = vst [vmem:[#allocation3 + $0x110] sm:$0xf] %v595
        %605 = vst [vmem:[#allocation3 + $0x18] sm:$0xf] %v337
        %606 = vst [vmem:[#allocation3 + $0x3c] sm:$0xf] %v339
        %607 = vst [vmem:[#allocation3 + $0x60] sm:$0xf] %v341
        %608 = vst [vmem:[#allocation3 + $0x84] sm:$0xf] %v343
        %609 = vst [vmem:[#allocation3 + $0xa8] sm:$0xf] %v345
        %610 = vst [vmem:[#allocation3 + $0xcc] sm:$0xf] %v347
        %611 = vst [vmem:[#allocation3 + $0xf0] sm:$0xf] %v349
        %612 = vst [vmem:[#allocation3 + $0x114] sm:$0xf] %v351
        %v614 = vshrl.u32 %v351, 16
        %v616 = vrot.slane %v614, 4
        %v617 = vshll.u32 %v351, 16
        %v619 = vrot.slane %v617, 5
        %v620 = vor.u32 %v616, %v619
        %v621 = vrot.slane %v620, 4
        %v623 = vshll.u32 %v352, 16
        %v625 = vrot.slane %v623, 5
        %v626 = vsel %vm363, %v621, %v625
        %628 = vst [vmem:[#allocation3 + $0x1c] sm:$0xf] %v405
        %629 = vst [vmem:[#allocation3 + $0x40] sm:$0xf] %v419
        %630 = vst [vmem:[#allocation3 + $0x64] sm:$0xf] %v433
        %631 = vst [vmem:[#allocation3 + $0x88] sm:$0xf] %v447
        %632 = vst [vmem:[#allocation3 + $0xac] sm:$0xf] %v461
        %633 = vst [vmem:[#allocation3 + $0xd0] sm:$0xf] %v475
        %634 = vst [vmem:[#allocation3 + $0xf4] sm:$0xf] %v580
        %635 = vst [vmem:[#allocation3 + $0x118] sm:$0xf] %v626
        %v638 = vrot.slane %v351, 5
        %v639 = vrot.slane %v638, 4
        %v640 = vrot.slane %v352, 5
        %v641 = vsel %vm510, %v639, %v640
        %643 = vst [vmem:[#allocation3 + $0x20] sm:$0xf] %v522
        %644 = vst [vmem:[#allocation3 + $0x44] sm:$0xf] %v526
        %645 = vst [vmem:[#allocation3 + $0x68] sm:$0xf] %v530
        %646 = vst [vmem:[#allocation3 + $0x8c] sm:$0xf] %v534
        %647 = vst [vmem:[#allocation3 + $0xb0] sm:$0xf] %v538
        %648 = vst [vmem:[#allocation3 + $0xd4] sm:$0xf] %v542
        %649 = vst [vmem:[#allocation3 + $0xf8] sm:$0xf] %v595
        %650 = vst [vmem:[#allocation3 + $0x11c] sm:$0xf] %v641
        %v651 = vld [vmem:[#allocation3] sm:$0xff]
        %v652 = vld [vmem:[#allocation3 + $0x8] sm:$0xff]
        %v653 = vld [vmem:[#allocation3 + $0x10] sm:$0xff]
        %v654 = vld [vmem:[#allocation3 + $0x18] sm:$0xff]
        %v655 = vld [vmem:[#allocation3 + $0x20] sm:$0xf]
        %v656 = vld [vmem:[#allocation3 + $0x24] sm:$0xff]
        %v657 = vld [vmem:[#allocation3 + $0x2c] sm:$0xff]
        %v658 = vld [vmem:[#allocation3 + $0x34] sm:$0xff]
        %v659 = vld [vmem:[#allocation3 + $0x3c] sm:$0xff]
        %v660 = vld [vmem:[#allocation3 + $0x44] sm:$0xf]
        %v661 = vld [vmem:[#allocation3 + $0x48] sm:$0xff]
        %v662 = vld [vmem:[#allocation3 + $0x50] sm:$0xff]
        %v663 = vld [vmem:[#allocation3 + $0x58] sm:$0xff]
        %v664 = vld [vmem:[#allocation3 + $0x60] sm:$0xff]
        %v665 = vld [vmem:[#allocation3 + $0x68] sm:$0xf]
        %v666 = vld [vmem:[#allocation3 + $0x6c] sm:$0xff]
        %v667 = vld [vmem:[#allocation3 + $0x74] sm:$0xff]
        %v668 = vld [vmem:[#allocation3 + $0x7c] sm:$0xff]
        %v669 = vld [vmem:[#allocation3 + $0x84] sm:$0xff]
        %v670 = vld [vmem:[#allocation3 + $0x8c] sm:$0xf]
        %v671 = vld [vmem:[#allocation3 + $0x90] sm:$0xff]
        %v672 = vld [vmem:[#allocation3 + $0x98] sm:$0xff]
        %v673 = vld [vmem:[#allocation3 + $0xa0] sm:$0xff]
        %v674 = vld [vmem:[#allocation3 + $0xa8] sm:$0xff]
        %v675 = vld [vmem:[#allocation3 + $0xb0] sm:$0xf]
        %v676 = vld [vmem:[#allocation3 + $0xb4] sm:$0xff]
        %v677 = vld [vmem:[#allocation3 + $0xbc] sm:$0xff]
        %v678 = vld [vmem:[#allocation3 + $0xc4] sm:$0xff]
        %v679 = vld [vmem:[#allocation3 + $0xcc] sm:$0xff]
        %v680 = vld [vmem:[#allocation3 + $0xd4] sm:$0xf]
        %v681 = vld [vmem:[#allocation3 + $0xd8] sm:$0xff]
        %v682 = vld [vmem:[#allocation3 + $0xe0] sm:$0xff]
        %v683 = vld [vmem:[#allocation3 + $0xe8] sm:$0xff]
        %v684 = vld [vmem:[#allocation3 + $0xf0] sm:$0xff]
        %v685 = vld [vmem:[#allocation3 + $0xf8] sm:$0xf]
        %v686 = vld [vmem:[#allocation3 + $0xfc] sm:$0xff]
        %v687 = vld [vmem:[#allocation3 + $0x104] sm:$0xff]
        %v688 = vld [vmem:[#allocation3 + $0x10c] sm:$0xff]
        %v689 = vld [vmem:[#allocation3 + $0x114] sm:$0xff]
        %v690 = vld [vmem:[#allocation3 + $0x11c] sm:$0xf]
        %v691 = vld [vmem:[%s1] sm:$0xf]
        %v692 = vld [vmem:[%s1 + $0x4] sm:$0xf]
        %v693 = vld [vmem:[%s1 + $0x8] sm:$0xf]
        %v694 = vld [vmem:[%s1 + $0xc] sm:$0xf]
        %v695 = vld [vmem:[%s1 + $0x10] sm:$0xf]
        %v696 = vld [vmem:[%s1 + $0x14] sm:$0xf]
        %v697 = vld [vmem:[%s1 + $0x18] sm:$0xf]
        %v698 = vld [vmem:[%s1 + $0x1c] sm:$0xf]
        %v699 = vld [vmem:[%s1 + $0x20] sm:$0xf]
        %v700 = vld [vmem:[%s1 + $0x24] sm:$0xf]
        %v701 = vld [vmem:[%s1 + $0x28] sm:$0xf]
        %v702 = vld [vmem:[%s1 + $0x2c] sm:$0xf]
        %v703 = vld [vmem:[%s1 + $0x30] sm:$0xf]
        %v704 = vld [vmem:[%s1 + $0x34] sm:$0xf]
        %v705 = vld [vmem:[%s1 + $0x38] sm:$0xf]
        %v706 = vld [vmem:[%s1 + $0x3c] sm:$0xf]
        %v707 = vld [vmem:[%s1 + $0x40] sm:$0xf]
        %v708 = vld [vmem:[%s1 + $0x44] sm:$0xf]
        %v709 = vld [vmem:[%s1 + $0x48] sm:$0xf]
        %v710 = vld [vmem:[%s1 + $0x4c] sm:$0xf]
        %v711 = vld [vmem:[%s1 + $0x50] sm:$0xf]
        %v712 = vld [vmem:[%s1 + $0x54] sm:$0xf]
        %v713 = vld [vmem:[%s1 + $0x58] sm:$0xf]
        %v714 = vld [vmem:[%s1 + $0x5c] sm:$0xf]
        %v715 = vld [vmem:[%s1 + $0x60] sm:$0xf]
        %v716 = vld [vmem:[%s1 + $0x64] sm:$0xf]
        %v717 = vld [vmem:[%s1 + $0x68] sm:$0xf]
        %v718 = vld [vmem:[%s1 + $0x6c] sm:$0xf]
        %v719 = vld [vmem:[%s1 + $0x70] sm:$0xf]
        %v720 = vld [vmem:[%s1 + $0x74] sm:$0xf]
        %v721 = vld [vmem:[%s1 + $0x78] sm:$0xf]
        %v722 = vld [vmem:[%s1 + $0x7c] sm:$0xf]
        %v723 = vld [vmem:[%s1 + $0x80] sm:$0xf]
        %v724 = vld [vmem:[%s1 + $0x84] sm:$0xf]
        %v725 = vld [vmem:[%s1 + $0x88] sm:$0xf]
        %v726 = vld [vmem:[%s1 + $0x8c] sm:$0xf]
        %v727 = vld [vmem:[%s1 + $0x90] sm:$0xf]
        %v728 = vld [vmem:[%s1 + $0x94] sm:$0xf]
        %v729 = vld [vmem:[%s1 + $0x98] sm:$0xf]
        %v730 = vld [vmem:[%s1 + $0x9c] sm:$0xf]
        %v731 = vld [vmem:[%s1 + $0xa0] sm:$0xf]
        %v732 = vld [vmem:[%s1 + $0xa4] sm:$0xf]
        %v733 = vld [vmem:[%s1 + $0xa8] sm:$0xf]
        %v734 = vld [vmem:[%s1 + $0xac] sm:$0xf]
        %v735 = vld [vmem:[%s1 + $0xb0] sm:$0xf]
        %v736 = vld [vmem:[%s1 + $0xb4] sm:$0xf]
        %v737 = vld [vmem:[%s1 + $0xb8] sm:$0xf]
        %v738 = vld [vmem:[%s1 + $0xbc] sm:$0xf]
        %v739 = vld [vmem:[%s1 + $0xc0] sm:$0xf]
        %v740 = vld [vmem:[%s1 + $0xc4] sm:$0xf]
        %v741 = vld [vmem:[%s1 + $0xc8] sm:$0xf]
        %v742 = vld [vmem:[%s1 + $0xcc] sm:$0xf]
        %v743 = vld [vmem:[%s1 + $0xd0] sm:$0xf]
        %v744 = vld [vmem:[%s1 + $0xd4] sm:$0xf]
        %v745 = vld [vmem:[%s1 + $0xd8] sm:$0xf]
        %v746 = vld [vmem:[%s1 + $0xdc] sm:$0xf]
        %v747 = vld [vmem:[%s1 + $0xe0] sm:$0xf]
        %v748 = vld [vmem:[%s1 + $0xe4] sm:$0xf]
        %v749 = vld [vmem:[%s1 + $0xe8] sm:$0xf]
        %v750 = vld [vmem:[%s1 + $0xec] sm:$0xf]
        %v751 = vld [vmem:[%s1 + $0xf0] sm:$0xf]
        %v752 = vld [vmem:[%s1 + $0xf4] sm:$0xf]
        %v753 = vld [vmem:[%s1 + $0xf8] sm:$0xf]
        %v754 = vld [vmem:[%s1 + $0xfc] sm:$0xf]
        %v755 = vld [vmem:[%s1 + $0x100] sm:$0xf]
        %v756 = vld [vmem:[%s1 + $0x104] sm:$0xf]
        %v757 = vld [vmem:[%s1 + $0x108] sm:$0xf]
        %v758 = vld [vmem:[%s1 + $0x10c] sm:$0xf]
        %v759 = vld [vmem:[%s1 + $0x110] sm:$0xf]
        %v760 = vld [vmem:[%s1 + $0x114] sm:$0xf]
        %v761 = vld [vmem:[%s1 + $0x118] sm:$0xf]
        %v762 = vld [vmem:[%s1 + $0x11c] sm:$0xf]
        %v763 = vld [vmem:[%s1 + $0x120] sm:$0xf]
        %v764 = vld [vmem:[%s1 + $0x124] sm:$0xf]
        %v765 = vld [vmem:[%s1 + $0x128] sm:$0xf]
        %v766 = vld [vmem:[%s1 + $0x12c] sm:$0xf]
        %v767 = vld [vmem:[%s1 + $0x130] sm:$0xf]
        %v768 = vld [vmem:[%s1 + $0x134] sm:$0xf]
        %v769 = vld [vmem:[%s1 + $0x138] sm:$0xf]
        %v770 = vld [vmem:[%s1 + $0x13c] sm:$0xf]
        %v771 = vld [vmem:[%s1 + $0x140] sm:$0xf]
        %v772 = vld [vmem:[%s1 + $0x144] sm:$0xf]
        %v773 = vld [vmem:[%s1 + $0x148] sm:$0xf]
        %v774 = vld [vmem:[%s1 + $0x14c] sm:$0xf]
        %v775 = vld [vmem:[%s1 + $0x150] sm:$0xf]
        %v776 = vld [vmem:[%s1 + $0x154] sm:$0xf]
        %v777 = vld [vmem:[%s1 + $0x158] sm:$0xf]
        %v778 = vld [vmem:[%s1 + $0x15c] sm:$0xf]
        %v779 = vld [vmem:[%s1 + $0x160] sm:$0xf]
        %v780 = vld [vmem:[%s1 + $0x164] sm:$0xf]
        %v781 = vld [vmem:[%s1 + $0x168] sm:$0xf]
        %v782 = vld [vmem:[%s1 + $0x16c] sm:$0xf]
        %v783 = vld [vmem:[%s1 + $0x170] sm:$0xf]
        %v784 = vld [vmem:[%s1 + $0x174] sm:$0xf]
        %v785 = vld [vmem:[%s1 + $0x178] sm:$0xf]
        %v786 = vld [vmem:[%s1 + $0x17c] sm:$0xf]
        %v787 = vld [vmem:[%s1 + $0x180] sm:$0xf]
        %v788 = vld [vmem:[%s1 + $0x184] sm:$0xf]
        %v789 = vld [vmem:[%s1 + $0x188] sm:$0xf]
        %v790 = vld [vmem:[%s1 + $0x18c] sm:$0xf]
        %v791 = vld [vmem:[%s1 + $0x190] sm:$0xf]
        %v792 = vld [vmem:[%s1 + $0x194] sm:$0xf]
        %v793 = vld [vmem:[%s1 + $0x198] sm:$0xf]
        %v794 = vld [vmem:[%s1 + $0x19c] sm:$0xf]
        %v795 = vld [vmem:[%s1 + $0x1a0] sm:$0xf]
        %v796 = vld [vmem:[%s1 + $0x1a4] sm:$0xf]
        %v797 = vld [vmem:[%s1 + $0x1a8] sm:$0xf]
        %v798 = vld [vmem:[%s1 + $0x1ac] sm:$0xf]
        %v799 = vld [vmem:[%s1 + $0x1b0] sm:$0xf]
        %v800 = vld [vmem:[%s1 + $0x1b4] sm:$0xf]
        %v801 = vld [vmem:[%s1 + $0x1b8] sm:$0xf]
        %v802 = vld [vmem:[%s1 + $0x1bc] sm:$0xf]
        %v803 = vld [vmem:[%s1 + $0x1c0] sm:$0xf]
        %v804 = vld [vmem:[%s1 + $0x1c4] sm:$0xf]
        %v805 = vld [vmem:[%s1 + $0x1c8] sm:$0xf]
        %v806 = vld [vmem:[%s1 + $0x1cc] sm:$0xf]
        %v807 = vld [vmem:[%s1 + $0x1d0] sm:$0xf]
        %v808 = vld [vmem:[%s1 + $0x1d4] sm:$0xf]
        %v809 = vld [vmem:[%s1 + $0x1d8] sm:$0xf]
        %v810 = vld [vmem:[%s1 + $0x1dc] sm:$0xf]
        %v811 = vld [vmem:[%s1 + $0x1e0] sm:$0xf]
        %v812 = vld [vmem:[%s1 + $0x1e4] sm:$0xf]
        %v813 = vld [vmem:[%s1 + $0x1e8] sm:$0xf]
        %v814 = vld [vmem:[%s1 + $0x1ec] sm:$0xf]
        %v815 = vld [vmem:[%s1 + $0x1f0] sm:$0xf]
        %v816 = vld [vmem:[%s1 + $0x1f4] sm:$0xf]
        %v817 = vld [vmem:[%s1 + $0x1f8] sm:$0xf]
        %v818 = vld [vmem:[%s1 + $0x1fc] sm:$0xf]
        %v819 = vld [vmem:[%s1 + $0x200] sm:$0xf]
        %v820 = vld [vmem:[%s1 + $0x204] sm:$0xf]
        %v821 = vld [vmem:[%s1 + $0x208] sm:$0xf]
        %v822 = vld [vmem:[%s1 + $0x20c] sm:$0xf]
        %v823 = vld [vmem:[%s1 + $0x210] sm:$0xf]
        %v824 = vld [vmem:[%s1 + $0x214] sm:$0xf]
        %v825 = vld [vmem:[%s1 + $0x218] sm:$0xf]
        %v826 = vld [vmem:[%s1 + $0x21c] sm:$0xf]
        %v827 = vld [vmem:[%s1 + $0x220] sm:$0xf]
        %v828 = vld [vmem:[%s1 + $0x224] sm:$0xf]
        %v829 = vld [vmem:[%s1 + $0x228] sm:$0xf]
        %v830 = vld [vmem:[%s1 + $0x22c] sm:$0xf]
        %v831 = vld [vmem:[%s1 + $0x230] sm:$0xf]
        %v832 = vld [vmem:[%s1 + $0x234] sm:$0xf]
        %v833 = vld [vmem:[%s1 + $0x238] sm:$0xf]
        %v834 = vld [vmem:[%s1 + $0x23c] sm:$0xf]
        %v835 = vld [vmem:[%s2] sm:$0x1]
        %v837 = vlaneseq
        %v838 = vshrl.u32 %v837, 7
        %v839 = vsub.s32 0, %v838
        %v840 = vrot.slane %v835, %v839
        %v882 = vunpack.c.l.b16 %v651
        %v883 = vunpack.c.h.b16 %v651
        %v884 = vunpack.c.l.b16 %v652
        %v885 = vunpack.c.h.b16 %v652
        %v886 = vunpack.c.l.b16 %v653
        %v887 = vunpack.c.h.b16 %v653
        %v888 = vunpack.c.l.b16 %v654
        %v889 = vunpack.c.h.b16 %v654
        %v890 = vunpack.c.l.b16 %v655
        %v891 = vunpack.c.l.b16 %v656
        %v892 = vunpack.c.h.b16 %v656
        %v893 = vunpack.c.l.b16 %v657
        %v894 = vunpack.c.h.b16 %v657
        %v895 = vunpack.c.l.b16 %v658
        %v896 = vunpack.c.h.b16 %v658
        %v897 = vunpack.c.l.b16 %v659
        %v898 = vunpack.c.h.b16 %v659
        %v899 = vunpack.c.l.b16 %v660
        %v900 = vunpack.c.l.b16 %v661
        %v901 = vunpack.c.h.b16 %v661
        %v902 = vunpack.c.l.b16 %v662
        %v903 = vunpack.c.h.b16 %v662
        %v904 = vunpack.c.l.b16 %v663
        %v905 = vunpack.c.h.b16 %v663
        %v906 = vunpack.c.l.b16 %v664
        %v907 = vunpack.c.h.b16 %v664
        %v908 = vunpack.c.l.b16 %v665
        %v909 = vunpack.c.l.b16 %v666
        %v910 = vunpack.c.h.b16 %v666
        %v911 = vunpack.c.l.b16 %v667
        %v912 = vunpack.c.h.b16 %v667
        %v913 = vunpack.c.l.b16 %v668
        %v914 = vunpack.c.h.b16 %v668
        %v915 = vunpack.c.l.b16 %v669
        %v916 = vunpack.c.h.b16 %v669
        %v917 = vunpack.c.l.b16 %v670
        %v918 = vunpack.c.l.b16 %v671
        %v919 = vunpack.c.h.b16 %v671
        %v920 = vunpack.c.l.b16 %v672
        %v921 = vunpack.c.h.b16 %v672
        %v922 = vunpack.c.l.b16 %v673
        %v923 = vunpack.c.h.b16 %v673
        %v924 = vunpack.c.l.b16 %v674
        %v925 = vunpack.c.h.b16 %v674
        %v926 = vunpack.c.l.b16 %v675
        %v927 = vunpack.c.l.b16 %v676
        %v928 = vunpack.c.h.b16 %v676
        %v929 = vunpack.c.l.b16 %v677
        %v930 = vunpack.c.h.b16 %v677
        %v931 = vunpack.c.l.b16 %v678
        %v932 = vunpack.c.h.b16 %v678
        %v933 = vunpack.c.l.b16 %v679
        %v934 = vunpack.c.h.b16 %v679
        %v935 = vunpack.c.l.b16 %v680
        %v936 = vunpack.c.l.b16 %v681
        %v937 = vunpack.c.h.b16 %v681
        %v938 = vunpack.c.l.b16 %v682
        %v939 = vunpack.c.h.b16 %v682
        %v940 = vunpack.c.l.b16 %v683
        %v941 = vunpack.c.h.b16 %v683
        %v942 = vunpack.c.l.b16 %v684
        %v943 = vunpack.c.h.b16 %v684
        %v944 = vunpack.c.l.b16 %v685
        %v945 = vunpack.c.l.b16 %v686
        %v946 = vunpack.c.h.b16 %v686
        %v947 = vunpack.c.l.b16 %v687
        %v948 = vunpack.c.h.b16 %v687
        %v949 = vunpack.c.l.b16 %v688
        %v950 = vunpack.c.h.b16 %v688
        %v951 = vunpack.c.l.b16 %v689
        %v952 = vunpack.c.h.b16 %v689
        %v953 = vunpack.c.l.b16 %v690
        %v954 = vpack.c.b16 %v891, %v882
        %v955 = vpack.c.b16 %v892, %v883
        %v956 = vpack.c.b16 %v893, %v884
        %v957 = vpack.c.b16 %v894, %v885
        %v958 = vpack.c.b16 %v895, %v886
        %v959 = vpack.c.b16 %v896, %v887
        %v960 = vpack.c.b16 %v897, %v888
        %v961 = vpack.c.b16 %v898, %v889
        %v962 = vpack.c.b16 %v899, %v890
        %v963 = vpack.c.b16 %v909, %v900
        %v964 = vpack.c.b16 %v910, %v901
        %v965 = vpack.c.b16 %v911, %v902
        %v966 = vpack.c.b16 %v912, %v903
        %v967 = vpack.c.b16 %v913, %v904
        %v968 = vpack.c.b16 %v914, %v905
        %v969 = vpack.c.b16 %v915, %v906
        %v970 = vpack.c.b16 %v916, %v907
        %v971 = vpack.c.b16 %v917, %v908
        %v972 = vpack.c.b16 %v927, %v918
        %v973 = vpack.c.b16 %v928, %v919
        %v974 = vpack.c.b16 %v929, %v920
        %v975 = vpack.c.b16 %v930, %v921
        %v976 = vpack.c.b16 %v931, %v922
        %v977 = vpack.c.b16 %v932, %v923
        %v978 = vpack.c.b16 %v933, %v924
        %v979 = vpack.c.b16 %v934, %v925
        %v980 = vpack.c.b16 %v935, %v926
        %v981 = vpack.c.b16 %v945, %v936
        %v982 = vpack.c.b16 %v946, %v937
        %v983 = vpack.c.b16 %v947, %v938
        %v984 = vpack.c.b16 %v948, %v939
        %v985 = vpack.c.b16 %v949, %v940
        %v986 = vpack.c.b16 %v950, %v941
        %v987 = vpack.c.b16 %v951, %v942
        %v988 = vpack.c.b16 %v952, %v943
        %v989 = vpack.c.b16 %v953, %v944
        %v1170 = vunpack.c.l.b16 %v691
        %v1171 = vunpack.c.l.b16 %v692
        %v1172 = vunpack.c.l.b16 %v693
        %v1173 = vunpack.c.l.b16 %v694
        %v1174 = vunpack.c.l.b16 %v695
        %v1175 = vunpack.c.l.b16 %v696
        %v1176 = vunpack.c.l.b16 %v697
        %v1177 = vunpack.c.l.b16 %v698
        %v1178 = vunpack.c.l.b16 %v699
        %v1179 = vunpack.c.l.b16 %v700
        %v1180 = vunpack.c.l.b16 %v701
        %v1181 = vunpack.c.l.b16 %v702
        %v1182 = vunpack.c.l.b16 %v703
        %v1183 = vunpack.c.l.b16 %v704
        %v1184 = vunpack.c.l.b16 %v705
        %v1185 = vunpack.c.l.b16 %v706
        %v1186 = vunpack.c.l.b16 %v707
        %v1187 = vunpack.c.l.b16 %v708
        %v1188 = vunpack.c.l.b16 %v709
        %v1189 = vunpack.c.l.b16 %v710
        %v1190 = vunpack.c.l.b16 %v711
        %v1191 = vunpack.c.l.b16 %v712
        %v1192 = vunpack.c.l.b16 %v713
        %v1193 = vunpack.c.l.b16 %v714
        %v1194 = vunpack.c.l.b16 %v715
        %v1195 = vunpack.c.l.b16 %v716
        %v1196 = vunpack.c.l.b16 %v717
        %v1197 = vunpack.c.l.b16 %v718
        %v1198 = vunpack.c.l.b16 %v719
        %v1199 = vunpack.c.l.b16 %v720
        %v1200 = vunpack.c.l.b16 %v721
        %v1201 = vunpack.c.l.b16 %v722
        %v1202 = vunpack.c.l.b16 %v723
        %v1203 = vunpack.c.l.b16 %v724
        %v1204 = vunpack.c.l.b16 %v725
        %v1205 = vunpack.c.l.b16 %v726
        %v1206 = vunpack.c.l.b16 %v727
        %v1207 = vunpack.c.l.b16 %v728
        %v1208 = vunpack.c.l.b16 %v729
        %v1209 = vunpack.c.l.b16 %v730
        %v1210 = vunpack.c.l.b16 %v731
        %v1211 = vunpack.c.l.b16 %v732
        %v1212 = vunpack.c.l.b16 %v733
        %v1213 = vunpack.c.l.b16 %v734
        %v1214 = vunpack.c.l.b16 %v735
        %v1215 = vunpack.c.l.b16 %v736
        %v1216 = vunpack.c.l.b16 %v737
        %v1217 = vunpack.c.l.b16 %v738
        %v1218 = vunpack.c.l.b16 %v739
        %v1219 = vunpack.c.l.b16 %v740
        %v1220 = vunpack.c.l.b16 %v741
        %v1221 = vunpack.c.l.b16 %v742
        %v1222 = vunpack.c.l.b16 %v743
        %v1223 = vunpack.c.l.b16 %v744
        %v1224 = vunpack.c.l.b16 %v745
        %v1225 = vunpack.c.l.b16 %v746
        %v1226 = vunpack.c.l.b16 %v747
        %v1227 = vunpack.c.l.b16 %v748
        %v1228 = vunpack.c.l.b16 %v749
        %v1229 = vunpack.c.l.b16 %v750
        %v1230 = vunpack.c.l.b16 %v751
        %v1231 = vunpack.c.l.b16 %v752
        %v1232 = vunpack.c.l.b16 %v753
        %v1233 = vunpack.c.l.b16 %v754
        %v1234 = vunpack.c.l.b16 %v755
        %v1235 = vunpack.c.l.b16 %v756
        %v1236 = vunpack.c.l.b16 %v757
        %v1237 = vunpack.c.l.b16 %v758
        %v1238 = vunpack.c.l.b16 %v759
        %v1239 = vunpack.c.l.b16 %v760
        %v1240 = vunpack.c.l.b16 %v761
        %v1241 = vunpack.c.l.b16 %v762
        %v1242 = vunpack.c.l.b16 %v763
        %v1243 = vunpack.c.l.b16 %v764
        %v1244 = vunpack.c.l.b16 %v765
        %v1245 = vunpack.c.l.b16 %v766
        %v1246 = vunpack.c.l.b16 %v767
        %v1247 = vunpack.c.l.b16 %v768
        %v1248 = vunpack.c.l.b16 %v769
        %v1249 = vunpack.c.l.b16 %v770
        %v1250 = vunpack.c.l.b16 %v771
        %v1251 = vunpack.c.l.b16 %v772
        %v1252 = vunpack.c.l.b16 %v773
        %v1253 = vunpack.c.l.b16 %v774
        %v1254 = vunpack.c.l.b16 %v775
        %v1255 = vunpack.c.l.b16 %v776
        %v1256 = vunpack.c.l.b16 %v777
        %v1257 = vunpack.c.l.b16 %v778
        %v1258 = vunpack.c.l.b16 %v779
        %v1259 = vunpack.c.l.b16 %v780
        %v1260 = vunpack.c.l.b16 %v781
        %v1261 = vunpack.c.l.b16 %v782
        %v1262 = vunpack.c.l.b16 %v783
        %v1263 = vunpack.c.l.b16 %v784
        %v1264 = vunpack.c.l.b16 %v785
        %v1265 = vunpack.c.l.b16 %v786
        %v1266 = vunpack.c.l.b16 %v787
        %v1267 = vunpack.c.l.b16 %v788
        %v1268 = vunpack.c.l.b16 %v789
        %v1269 = vunpack.c.l.b16 %v790
        %v1270 = vunpack.c.l.b16 %v791
        %v1271 = vunpack.c.l.b16 %v792
        %v1272 = vunpack.c.l.b16 %v793
        %v1273 = vunpack.c.l.b16 %v794
        %v1274 = vunpack.c.l.b16 %v795
        %v1275 = vunpack.c.l.b16 %v796
        %v1276 = vunpack.c.l.b16 %v797
        %v1277 = vunpack.c.l.b16 %v798
        %v1278 = vunpack.c.l.b16 %v799
        %v1279 = vunpack.c.l.b16 %v800
        %v1280 = vunpack.c.l.b16 %v801
        %v1281 = vunpack.c.l.b16 %v802
        %v1282 = vunpack.c.l.b16 %v803
        %v1283 = vunpack.c.l.b16 %v804
        %v1284 = vunpack.c.l.b16 %v805
        %v1285 = vunpack.c.l.b16 %v806
        %v1286 = vunpack.c.l.b16 %v807
        %v1287 = vunpack.c.l.b16 %v808
        %v1288 = vunpack.c.l.b16 %v809
        %v1289 = vunpack.c.l.b16 %v810
        %v1290 = vunpack.c.l.b16 %v811
        %v1291 = vunpack.c.l.b16 %v812
        %v1292 = vunpack.c.l.b16 %v813
        %v1293 = vunpack.c.l.b16 %v814
        %v1294 = vunpack.c.l.b16 %v815
        %v1295 = vunpack.c.l.b16 %v816
        %v1296 = vunpack.c.l.b16 %v817
        %v1297 = vunpack.c.l.b16 %v818
        %v1298 = vunpack.c.l.b16 %v819
        %v1299 = vunpack.c.l.b16 %v820
        %v1300 = vunpack.c.l.b16 %v821
        %v1301 = vunpack.c.l.b16 %v822
        %v1302 = vunpack.c.l.b16 %v823
        %v1303 = vunpack.c.l.b16 %v824
        %v1304 = vunpack.c.l.b16 %v825
        %v1305 = vunpack.c.l.b16 %v826
        %v1306 = vunpack.c.l.b16 %v827
        %v1307 = vunpack.c.l.b16 %v828
        %v1308 = vunpack.c.l.b16 %v829
        %v1309 = vunpack.c.l.b16 %v830
        %v1310 = vunpack.c.l.b16 %v831
        %v1311 = vunpack.c.l.b16 %v832
        %v1312 = vunpack.c.l.b16 %v833
        %v1313 = vunpack.c.l.b16 %v834
        %v1314 = vpack.c.b16 %v1171, %v1170
        %v1315 = vpack.c.b16 %v1173, %v1172
        %v1316 = vpack.c.b16 %v1175, %v1174
        %v1317 = vpack.c.b16 %v1177, %v1176
        %v1318 = vpack.c.b16 %v1179, %v1178
        %v1319 = vpack.c.b16 %v1181, %v1180
        %v1320 = vpack.c.b16 %v1183, %v1182
        %v1321 = vpack.c.b16 %v1185, %v1184
        %v1322 = vpack.c.b16 %v1187, %v1186
        %v1323 = vpack.c.b16 %v1189, %v1188
        %v1324 = vpack.c.b16 %v1191, %v1190
        %v1325 = vpack.c.b16 %v1193, %v1192
        %v1326 = vpack.c.b16 %v1195, %v1194
        %v1327 = vpack.c.b16 %v1197, %v1196
        %v1328 = vpack.c.b16 %v1199, %v1198
        %v1329 = vpack.c.b16 %v1201, %v1200
        %v1330 = vpack.c.b16 %v1203, %v1202
        %v1331 = vpack.c.b16 %v1205, %v1204
        %v1332 = vpack.c.b16 %v1207, %v1206
        %v1333 = vpack.c.b16 %v1209, %v1208
        %v1334 = vpack.c.b16 %v1211, %v1210
        %v1335 = vpack.c.b16 %v1213, %v1212
        %v1336 = vpack.c.b16 %v1215, %v1214
        %v1337 = vpack.c.b16 %v1217, %v1216
        %v1338 = vpack.c.b16 %v1219, %v1218
        %v1339 = vpack.c.b16 %v1221, %v1220
        %v1340 = vpack.c.b16 %v1223, %v1222
        %v1341 = vpack.c.b16 %v1225, %v1224
        %v1342 = vpack.c.b16 %v1227, %v1226
        %v1343 = vpack.c.b16 %v1229, %v1228
        %v1344 = vpack.c.b16 %v1231, %v1230
        %v1345 = vpack.c.b16 %v1233, %v1232
        %v1346 = vpack.c.b16 %v1235, %v1234
        %v1347 = vpack.c.b16 %v1237, %v1236
        %v1348 = vpack.c.b16 %v1239, %v1238
        %v1349 = vpack.c.b16 %v1241, %v1240
        %v1350 = vpack.c.b16 %v1243, %v1242
        %v1351 = vpack.c.b16 %v1245, %v1244
        %v1352 = vpack.c.b16 %v1247, %v1246
        %v1353 = vpack.c.b16 %v1249, %v1248
        %v1354 = vpack.c.b16 %v1251, %v1250
        %v1355 = vpack.c.b16 %v1253, %v1252
        %v1356 = vpack.c.b16 %v1255, %v1254
        %v1357 = vpack.c.b16 %v1257, %v1256
        %v1358 = vpack.c.b16 %v1259, %v1258
        %v1359 = vpack.c.b16 %v1261, %v1260
        %v1360 = vpack.c.b16 %v1263, %v1262
        %v1361 = vpack.c.b16 %v1265, %v1264
        %v1362 = vpack.c.b16 %v1267, %v1266
        %v1363 = vpack.c.b16 %v1269, %v1268
        %v1364 = vpack.c.b16 %v1271, %v1270
        %v1365 = vpack.c.b16 %v1273, %v1272
        %v1366 = vpack.c.b16 %v1275, %v1274
        %v1367 = vpack.c.b16 %v1277, %v1276
        %v1368 = vpack.c.b16 %v1279, %v1278
        %v1369 = vpack.c.b16 %v1281, %v1280
        %v1370 = vpack.c.b16 %v1283, %v1282
        %v1371 = vpack.c.b16 %v1285, %v1284
        %v1372 = vpack.c.b16 %v1287, %v1286
        %v1373 = vpack.c.b16 %v1289, %v1288
        %v1374 = vpack.c.b16 %v1291, %v1290
        %v1375 = vpack.c.b16 %v1293, %v1292
        %v1376 = vpack.c.b16 %v1295, %v1294
        %v1377 = vpack.c.b16 %v1297, %v1296
        %v1378 = vpack.c.b16 %v1299, %v1298
        %v1379 = vpack.c.b16 %v1301, %v1300
        %v1380 = vpack.c.b16 %v1303, %v1302
        %v1381 = vpack.c.b16 %v1305, %v1304
        %v1382 = vpack.c.b16 %v1307, %v1306
        %v1383 = vpack.c.b16 %v1309, %v1308
        %v1384 = vpack.c.b16 %v1311, %v1310
        %v1385 = vpack.c.b16 %v1313, %v1312
        %1458 = vmatprep.subr.bf16.mxu0 0
        %1459 = vmatpush1.bf16.msra.mxu0 %v1321
        %1460 = vmatprep.subr.bf16.mxu0 0
        %1461 = vmatpush1.bf16.msra.mxu0 %v1320
        %1462 = vmatprep.subr.bf16.mxu0 0
        %1463 = vmatpush1.bf16.msra.mxu0 %v1319
        %1464 = vmatprep.subr.bf16.mxu0 0
        %1465 = vmatpush1.bf16.msra.mxu0 %v1318
        %1466 = vmatprep.subr.bf16.mxu0 0
        %1467 = vmatpush1.bf16.msra.mxu0 %v1317
        %1468 = vmatprep.subr.bf16.mxu0 0
        %1469 = vmatpush1.bf16.msra.mxu0 %v1316
        %1470 = vmatprep.subr.bf16.mxu0 0
        %1471 = vmatpush1.bf16.msra.mxu0 %v1315
        %1472 = vmatprep.subr.bf16.mxu0 0
        %1473 = vmatpush1.bf16.msra.mxu0 %v1314
        %1474 = vmatprep.subr.bf16.mxu0 0
        %1475 = vmatpush2.bf16.msra.mxu0 %v1329
        %1476 = vmatprep.subr.bf16.mxu0 0
        %1477 = vmatpush2.bf16.msra.mxu0 %v1328
        %1478 = vmatprep.subr.bf16.mxu0 0
        %1479 = vmatpush2.bf16.msra.mxu0 %v1327
        %1480 = vmatprep.subr.bf16.mxu0 0
        %1481 = vmatpush2.bf16.msra.mxu0 %v1326
        %1482 = vmatprep.subr.bf16.mxu0 0
        %1483 = vmatpush2.bf16.msra.mxu0 %v1325
        %1484 = vmatprep.subr.bf16.mxu0 0
        %1485 = vmatpush2.bf16.msra.mxu0 %v1324
        %1486 = vmatprep.subr.bf16.mxu0 0
        %1487 = vmatpush2.bf16.msra.mxu0 %v1323
        %1488 = vmatprep.subr.bf16.mxu0 0
        %1489 = vmatpush2.bf16.msra.mxu0 %v1322
        %1490 = vmatprep.mubr.bf16.mxu0 %v955
        %1491 = vmatmul.mubr.bf16.gmra.mxu0 %v954
        %v1492 = vpop.f32.mrf.mxu0
        %v1493 = vadd.f32 %v840, %v1492
        %v1494 = vpop.f32.mrf.mxu0
        %v1495 = vpop.f32.mrf.mxu0
        %v1496 = vadd.f32 %v840, %v1495
        %v1497 = vpop.f32.mrf.mxu0
        %1498 = vmatprep.mubr.bf16.mxu0 %v964
        %1499 = vmatmul.mubr.bf16.gmra.mxu0 %v963
        %v1500 = vpop.f32.mrf.mxu0
        %v1501 = vadd.f32 %v840, %v1500
        %v1502 = vpop.f32.mrf.mxu0
        %v1503 = vpop.f32.mrf.mxu0
        %v1504 = vadd.f32 %v840, %v1503
        %v1505 = vpop.f32.mrf.mxu0
        %1506 = vmatprep.mubr.bf16.mxu0 %v973
        %1507 = vmatmul.mubr.bf16.gmra.mxu0 %v972
        %v1508 = vpop.f32.mrf.mxu0
        %v1509 = vadd.f32 %v840, %v1508
        %v1510 = vpop.f32.mrf.mxu0
        %v1511 = vpop.f32.mrf.mxu0
        %v1512 = vadd.f32 %v840, %v1511
        %v1513 = vpop.f32.mrf.mxu0
        %1514 = vmatprep.mubr.bf16.mxu0 %v982
        %1515 = vmatmul.mubr.bf16.gmra.mxu0 %v981
        %v1516 = vpop.f32.mrf.mxu0
        %v1517 = vadd.f32 %v840, %v1516
        %v1518 = vpop.f32.mrf.mxu0
        %v1519 = vpop.f32.mrf.mxu0
        %v1520 = vadd.f32 %v840, %v1519
        %v1521 = vpop.f32.mrf.mxu0
        %1522 = vdwg.mxu0
        %1523 = vmatprep.subr.bf16.mxu0 0
        %1524 = vmatpush1.bf16.msra.mxu0 %v1337
        %1525 = vmatprep.subr.bf16.mxu0 0
        %1526 = vmatpush1.bf16.msra.mxu0 %v1336
        %1527 = vmatprep.subr.bf16.mxu0 0
        %1528 = vmatpush1.bf16.msra.mxu0 %v1335
        %1529 = vmatprep.subr.bf16.mxu0 0
        %1530 = vmatpush1.bf16.msra.mxu0 %v1334
        %1531 = vmatprep.subr.bf16.mxu0 0
        %1532 = vmatpush1.bf16.msra.mxu0 %v1333
        %1533 = vmatprep.subr.bf16.mxu0 0
        %1534 = vmatpush1.bf16.msra.mxu0 %v1332
        %1535 = vmatprep.subr.bf16.mxu0 0
        %1536 = vmatpush1.bf16.msra.mxu0 %v1331
        %1537 = vmatprep.subr.bf16.mxu0 0
        %1538 = vmatpush1.bf16.msra.mxu0 %v1330
        %1539 = vmatprep.subr.bf16.mxu0 0
        %1540 = vmatpush2.bf16.msra.mxu0 %v1345
        %1541 = vmatprep.subr.bf16.mxu0 0
        %1542 = vmatpush2.bf16.msra.mxu0 %v1344
        %1543 = vmatprep.subr.bf16.mxu0 0
        %1544 = vmatpush2.bf16.msra.mxu0 %v1343
        %1545 = vmatprep.subr.bf16.mxu0 0
        %1546 = vmatpush2.bf16.msra.mxu0 %v1342
        %1547 = vmatprep.subr.bf16.mxu0 0
        %1548 = vmatpush2.bf16.msra.mxu0 %v1341
        %1549 = vmatprep.subr.bf16.mxu0 0
        %1550 = vmatpush2.bf16.msra.mxu0 %v1340
        %1551 = vmatprep.subr.bf16.mxu0 0
        %1552 = vmatpush2.bf16.msra.mxu0 %v1339
        %1553 = vmatprep.subr.bf16.mxu0 0
        %1554 = vmatpush2.bf16.msra.mxu0 %v1338
        %1555 = vmatprep.mubr.bf16.mxu0 %v957
        %1556 = vmatmul.mubr.bf16.gmra.mxu0 %v956
        %v1557 = vpop.f32.mrf.mxu0
        %v1558 = vadd.f32 %v1493, %v1557
        %v1559 = vpop.f32.mrf.mxu0
        %v1560 = vpop.f32.mrf.mxu0
        %v1561 = vadd.f32 %v1496, %v1560
        %v1562 = vpop.f32.mrf.mxu0
        %1563 = vmatprep.mubr.bf16.mxu0 %v966
        %1564 = vmatmul.mubr.bf16.gmra.mxu0 %v965
        %v1565 = vpop.f32.mrf.mxu0
        %v1566 = vadd.f32 %v1501, %v1565
        %v1567 = vpop.f32.mrf.mxu0
        %v1568 = vpop.f32.mrf.mxu0
        %v1569 = vadd.f32 %v1504, %v1568
        %v1570 = vpop.f32.mrf.mxu0
        %1571 = vmatprep.mubr.bf16.mxu0 %v975
        %1572 = vmatmul.mubr.bf16.gmra.mxu0 %v974
        %v1573 = vpop.f32.mrf.mxu0
        %v1574 = vadd.f32 %v1509, %v1573
        %v1575 = vpop.f32.mrf.mxu0
        %v1576 = vpop.f32.mrf.mxu0
        %v1577 = vadd.f32 %v1512, %v1576
        %v1578 = vpop.f32.mrf.mxu0
        %1579 = vmatprep.mubr.bf16.mxu0 %v984
        %1580 = vmatmul.mubr.bf16.gmra.mxu0 %v983
        %v1581 = vpop.f32.mrf.mxu0
        %v1582 = vadd.f32 %v1517, %v1581
        %v1583 = vpop.f32.mrf.mxu0
        %v1584 = vpop.f32.mrf.mxu0
        %v1585 = vadd.f32 %v1520, %v1584
        %v1586 = vpop.f32.mrf.mxu0
        %1587 = vdwg.mxu0
        %1588 = vmatprep.subr.bf16.mxu0 0
        %1589 = vmatpush1.bf16.msra.mxu0 %v1353
        %1590 = vmatprep.subr.bf16.mxu0 0
        %1591 = vmatpush1.bf16.msra.mxu0 %v1352
        %1592 = vmatprep.subr.bf16.mxu0 0
        %1593 = vmatpush1.bf16.msra.mxu0 %v1351
        %1594 = vmatprep.subr.bf16.mxu0 0
        %1595 = vmatpush1.bf16.msra.mxu0 %v1350
        %1596 = vmatprep.subr.bf16.mxu0 0
        %1597 = vmatpush1.bf16.msra.mxu0 %v1349
        %1598 = vmatprep.subr.bf16.mxu0 0
        %1599 = vmatpush1.bf16.msra.mxu0 %v1348
        %1600 = vmatprep.subr.bf16.mxu0 0
        %1601 = vmatpush1.bf16.msra.mxu0 %v1347
        %1602 = vmatprep.subr.bf16.mxu0 0
        %1603 = vmatpush1.bf16.msra.mxu0 %v1346
        %1604 = vmatprep.subr.bf16.mxu0 0
        %1605 = vmatpush2.bf16.msra.mxu0 %v1361
        %1606 = vmatprep.subr.bf16.mxu0 0
        %1607 = vmatpush2.bf16.msra.mxu0 %v1360
        %1608 = vmatprep.subr.bf16.mxu0 0
        %1609 = vmatpush2.bf16.msra.mxu0 %v1359
        %1610 = vmatprep.subr.bf16.mxu0 0
        %1611 = vmatpush2.bf16.msra.mxu0 %v1358
        %1612 = vmatprep.subr.bf16.mxu0 0
        %1613 = vmatpush2.bf16.msra.mxu0 %v1357
        %1614 = vmatprep.subr.bf16.mxu0 0
        %1615 = vmatpush2.bf16.msra.mxu0 %v1356
        %1616 = vmatprep.subr.bf16.mxu0 0
        %1617 = vmatpush2.bf16.msra.mxu0 %v1355
        %1618 = vmatprep.subr.bf16.mxu0 0
        %1619 = vmatpush2.bf16.msra.mxu0 %v1354
        %1620 = vmatprep.mubr.bf16.mxu0 %v959
        %1621 = vmatmul.mubr.bf16.gmra.mxu0 %v958
        %v1622 = vpop.f32.mrf.mxu0
        %v1623 = vadd.f32 %v1558, %v1622
        %v1624 = vpop.f32.mrf.mxu0
        %v1625 = vpop.f32.mrf.mxu0
        %v1626 = vadd.f32 %v1561, %v1625
        %v1627 = vpop.f32.mrf.mxu0
        %1628 = vmatprep.mubr.bf16.mxu0 %v968
        %1629 = vmatmul.mubr.bf16.gmra.mxu0 %v967
        %v1630 = vpop.f32.mrf.mxu0
        %v1631 = vadd.f32 %v1566, %v1630
        %v1632 = vpop.f32.mrf.mxu0
        %v1633 = vpop.f32.mrf.mxu0
        %v1634 = vadd.f32 %v1569, %v1633
        %v1635 = vpop.f32.mrf.mxu0
        %1636 = vmatprep.mubr.bf16.mxu0 %v977
        %1637 = vmatmul.mubr.bf16.gmra.mxu0 %v976
        %v1638 = vpop.f32.mrf.mxu0
        %v1639 = vadd.f32 %v1574, %v1638
        %v1640 = vpop.f32.mrf.mxu0
        %v1641 = vpop.f32.mrf.mxu0
        %v1642 = vadd.f32 %v1577, %v1641
        %v1643 = vpop.f32.mrf.mxu0
        %1644 = vmatprep.mubr.bf16.mxu0 %v986
        %1645 = vmatmul.mubr.bf16.gmra.mxu0 %v985
        %v1646 = vpop.f32.mrf.mxu0
        %v1647 = vadd.f32 %v1582, %v1646
        %v1648 = vpop.f32.mrf.mxu0
        %v1649 = vpop.f32.mrf.mxu0
        %v1650 = vadd.f32 %v1585, %v1649
        %v1651 = vpop.f32.mrf.mxu0
        %1652 = vdwg.mxu0
        %1653 = vmatprep.subr.bf16.mxu0 0
        %1654 = vmatpush1.bf16.msra.mxu0 %v1369
        %1655 = vmatprep.subr.bf16.mxu0 0
        %1656 = vmatpush1.bf16.msra.mxu0 %v1368
        %1657 = vmatprep.subr.bf16.mxu0 0
        %1658 = vmatpush1.bf16.msra.mxu0 %v1367
        %1659 = vmatprep.subr.bf16.mxu0 0
        %1660 = vmatpush1.bf16.msra.mxu0 %v1366
        %1661 = vmatprep.subr.bf16.mxu0 0
        %1662 = vmatpush1.bf16.msra.mxu0 %v1365
        %1663 = vmatprep.subr.bf16.mxu0 0
        %1664 = vmatpush1.bf16.msra.mxu0 %v1364
        %1665 = vmatprep.subr.bf16.mxu0 0
        %1666 = vmatpush1.bf16.msra.mxu0 %v1363
        %1667 = vmatprep.subr.bf16.mxu0 0
        %1668 = vmatpush1.bf16.msra.mxu0 %v1362
        %1669 = vmatprep.subr.bf16.mxu0 0
        %1670 = vmatpush2.bf16.msra.mxu0 %v1377
        %1671 = vmatprep.subr.bf16.mxu0 0
        %1672 = vmatpush2.bf16.msra.mxu0 %v1376
        %1673 = vmatprep.subr.bf16.mxu0 0
        %1674 = vmatpush2.bf16.msra.mxu0 %v1375
        %1675 = vmatprep.subr.bf16.mxu0 0
        %1676 = vmatpush2.bf16.msra.mxu0 %v1374
        %1677 = vmatprep.subr.bf16.mxu0 0
        %1678 = vmatpush2.bf16.msra.mxu0 %v1373
        %1679 = vmatprep.subr.bf16.mxu0 0
        %1680 = vmatpush2.bf16.msra.mxu0 %v1372
        %1681 = vmatprep.subr.bf16.mxu0 0
        %1682 = vmatpush2.bf16.msra.mxu0 %v1371
        %1683 = vmatprep.subr.bf16.mxu0 0
        %1684 = vmatpush2.bf16.msra.mxu0 %v1370
        %1685 = vmatprep.mubr.bf16.mxu0 %v961
        %1686 = vmatmul.mubr.bf16.gmra.mxu0 %v960
        %v1687 = vpop.f32.mrf.mxu0
        %v1688 = vadd.f32 %v1623, %v1687
        %v1689 = vpop.f32.mrf.mxu0
        %v1690 = vpop.f32.mrf.mxu0
        %v1691 = vadd.f32 %v1626, %v1690
        %v1692 = vpop.f32.mrf.mxu0
        %1693 = vmatprep.mubr.bf16.mxu0 %v970
        %1694 = vmatmul.mubr.bf16.gmra.mxu0 %v969
        %v1695 = vpop.f32.mrf.mxu0
        %v1696 = vadd.f32 %v1631, %v1695
        %v1697 = vpop.f32.mrf.mxu0
        %v1698 = vpop.f32.mrf.mxu0
        %v1699 = vadd.f32 %v1634, %v1698
        %v1700 = vpop.f32.mrf.mxu0
        %1701 = vmatprep.mubr.bf16.mxu0 %v979
        %1702 = vmatmul.mubr.bf16.gmra.mxu0 %v978
        %v1703 = vpop.f32.mrf.mxu0
        %v1704 = vadd.f32 %v1639, %v1703
        %v1705 = vpop.f32.mrf.mxu0
        %v1706 = vpop.f32.mrf.mxu0
        %v1707 = vadd.f32 %v1642, %v1706
        %v1708 = vpop.f32.mrf.mxu0
        %1709 = vmatprep.mubr.bf16.mxu0 %v988
        %1710 = vmatmul.mubr.bf16.gmra.mxu0 %v987
        %v1711 = vpop.f32.mrf.mxu0
        %v1712 = vadd.f32 %v1647, %v1711
        %v1713 = vpop.f32.mrf.mxu0
        %v1714 = vpop.f32.mrf.mxu0
        %v1715 = vadd.f32 %v1650, %v1714
        %v1716 = vpop.f32.mrf.mxu0
        %1717 = vdwg.mxu0
        %1718 = vmatprep.subr.bf16.mxu0 0
        %1719 = vmatpush1.bf16.msra.mxu0 %v1385
        %1720 = vmatprep.subr.bf16.mxu0 0
        %1721 = vmatpush1.bf16.msra.mxu0 %v1384
        %1722 = vmatprep.subr.bf16.mxu0 0
        %1723 = vmatpush1.bf16.msra.mxu0 %v1383
        %1724 = vmatprep.subr.bf16.mxu0 0
        %1725 = vmatpush1.bf16.msra.mxu0 %v1382
        %1726 = vmatprep.subr.bf16.mxu0 0
        %1727 = vmatpush1.bf16.msra.mxu0 %v1381
        %1728 = vmatprep.subr.bf16.mxu0 0
        %1729 = vmatpush1.bf16.msra.mxu0 %v1380
        %1730 = vmatprep.subr.bf16.mxu0 0
        %1731 = vmatpush1.bf16.msra.mxu0 %v1379
        %1732 = vmatprep.subr.bf16.mxu0 0
        %1733 = vmatpush1.bf16.msra.mxu0 %v1378
        %1734 = vmatprep.subr.bf16.mxu0 0
        %1735 = vmatpush2.bf16.msra.mxu0 0
        %1736 = vmatprep.subr.bf16.mxu0 0
        %1737 = vmatpush2.bf16.msra.mxu0 0
        %1738 = vmatprep.subr.bf16.mxu0 0
        %1739 = vmatpush2.bf16.msra.mxu0 0
        %1740 = vmatprep.subr.bf16.mxu0 0
        %1741 = vmatpush2.bf16.msra.mxu0 0
        %1742 = vmatprep.subr.bf16.mxu0 0
        %1743 = vmatpush2.bf16.msra.mxu0 0
        %1744 = vmatprep.subr.bf16.mxu0 0
        %1745 = vmatpush2.bf16.msra.mxu0 0
        %1746 = vmatprep.subr.bf16.mxu0 0
        %1747 = vmatpush2.bf16.msra.mxu0 0
        %1748 = vmatprep.subr.bf16.mxu0 0
        %1749 = vmatpush2.bf16.msra.mxu0 0
        %1750 = vmatprep.mubr.bf16.mxu0 0
        %1751 = vmatmul.mubr.bf16.gmra.mxu0 %v962
        %v1752 = vpop.f32.mrf.mxu0
        %v1753 = vadd.f32 %v1688, %v1752
        %v1754 = vpop.f32.mrf.mxu0
        %v1755 = vpop.f32.mrf.mxu0
        %v1756 = vadd.f32 %v1691, %v1755
        %v1757 = vpop.f32.mrf.mxu0
        %1758 = vmatprep.mubr.bf16.mxu0 0
        %1759 = vmatmul.mubr.bf16.gmra.mxu0 %v971
        %v1760 = vpop.f32.mrf.mxu0
        %v1761 = vadd.f32 %v1696, %v1760
        %v1762 = vpop.f32.mrf.mxu0
        %v1763 = vpop.f32.mrf.mxu0
        %v1764 = vadd.f32 %v1699, %v1763
        %v1765 = vpop.f32.mrf.mxu0
        %1766 = vmatprep.mubr.bf16.mxu0 0
        %1767 = vmatmul.mubr.bf16.gmra.mxu0 %v980
        %v1768 = vpop.f32.mrf.mxu0
        %v1769 = vadd.f32 %v1704, %v1768
        %v1770 = vpop.f32.mrf.mxu0
        %v1771 = vpop.f32.mrf.mxu0
        %v1772 = vadd.f32 %v1707, %v1771
        %v1773 = vpop.f32.mrf.mxu0
        %1774 = vmatprep.mubr.bf16.mxu0 0
        %1775 = vmatmul.mubr.bf16.gmra.mxu0 %v989
        %v1776 = vpop.f32.mrf.mxu0
        %v1777 = vadd.f32 %v1712, %v1776
        %v1778 = vpop.f32.mrf.mxu0
        %v1779 = vpop.f32.mrf.mxu0
        %v1780 = vadd.f32 %v1715, %v1779
        %v1781 = vpop.f32.mrf.mxu0
        %1782 = vdwg.mxu0
        %v1783 = vmax.f32 %v1753, 0.0
        %v1784 = vmax.f32 %v1756, 0.0
        %v1785 = vmax.f32 %v1761, 0.0
        %v1786 = vmax.f32 %v1764, 0.0
        %v1787 = vmax.f32 %v1769, 0.0
        %v1788 = vmax.f32 %v1772, 0.0
        %v1789 = vmax.f32 %v1777, 0.0
        %v1790 = vmax.f32 %v1780, 0.0
        %1791 = vst [vmem:[%s163] sm:$0xff] %v1783
        %1792 = vst [vmem:[%s163 + $0x8] sm:$0xff] %v1784
        %1793 = vst [vmem:[%s163 + $0x10] sm:$0xff] %v1785
        %1794 = vst [vmem:[%s163 + $0x18] sm:$0xff] %v1786
        %1795 = vst [vmem:[%s163 + $0x20] sm:$0xff] %v1787
        %1796 = vst [vmem:[%s163 + $0x28] sm:$0xff] %v1788
        %1797 = vst [vmem:[%s163 + $0x30] sm:$0xff] %v1789
        %1798 = vst [vmem:[%s163 + $0x38] sm:$0xff] %v1790
        %s1799 = sand.u32 %s93, 1
        %s1800 = scalar_lea.sflag [#allocation5], %s1799
        %s1801 = sand.u32 %s93, 1
        %s1802 = smul.addr %s1801, 64
        %s1803 = scalar_lea.vmem [#allocation4], %s1802
        // Predicated region
        $region33: #{vlayer159_forward.1} parent=31 // pred_check
          %p1804 = pneg %p103
        $region34: #{vlayer159_forward.1} parent=31 // pred_check_branch
          %1806 = sbr.rel (%p1804) target = $region36
        $region35: #{vlayer159_forward.1} parent=31 // pred_region
          %s1808 = ssub.s32 1024, 1024
          %1809 = vsyncadd %s1800, %s1808
          %s1810 = smul.addr %s17, 8
          %s1811 = smul.addr %s1810, 128
          %s1812 = scalar_lea.hbm %s3, %s1811
          %s1813 = sshll.u32 %s1803, 4
          %s1814 = int_to_ptr.vmem [resolvable:$true] %s1813
          %1819 = dma.vmem_to_hbm [thread:$0]  %s1814, 1024, %s1812, %s1800, 128, 128, 8
        $region36: #{vlayer159_forward.1} parent=31 // pred_fallthru
          _
      $region32: #{vlayer159_forward.1} parent=5 // pred_fallthru
        _
      %p1820 = scmp.le.s32.totalorder 2, %s12
      // Predicated region
      $region37: #{vlayer159_forward.1} parent=5 // pred_check
        %p1821 = pneg %p1820
      $region38: #{vlayer159_forward.1} parent=5 // pred_check_branch
        %1823 = sbr.rel (%p1821) target = $region40
      $region39: #{vlayer159_forward.1} parent=5 // pred_region
        %s1824 = ssub.s32 %s12, 2
        // Predicated region
        $region41: #{vlayer159_forward.1} parent=39 // pred_check
          %p1825 = pneg %p109
        $region42: #{vlayer159_forward.1} parent=39 // pred_check_branch
          %1827 = sbr.rel (%p1825) target = $region44
        $region43: #{vlayer159_forward.1} parent=39 // pred_region
          %s1828 = sand.u32 %s94, 1
          %s1829 = scalar_lea.sflag [#allocation5], %s1828
          %s1830 = sand.u32 %s94, 1
          %s1831 = smul.addr %s1830, 64
          %s1832 = scalar_lea.vmem [#allocation4], %s1831
          %1833 = dma.done %s1829, 1024
        $region44: #{vlayer159_forward.1} parent=39 // pred_fallthru
          _
      $region40: #{vlayer159_forward.1} parent=5 // pred_fallthru
        _
    $region6: #{vlayer159_forward.1} parent=1 // loop_footer
      %s16 = sadd.s32 1, %s12
    $region7: #{vlayer159_forward.1} parent=1 // loop_footer_branch
      %11 = sbr.rel target = $region3
    $region8: #{vlayer159_forward.1} parent=1 // loop_exit
      _
    %1834 = vsyncpa [#allocation5], 1
    %s1835 = scalar_lea.sflag [#allocation5], 1
    %1836 = vsyncpa %s1835, 1

</llo_original>
